<compile_context>
chip_gen: v7x
topology: tpu7x:2x2x1
jax: 0.10.0
libtpu: 0.0.40
codegen_flags: <defaults>
</compile_context>

<pallas_src>
import functools
import math

import jax
import jax.numpy as jnp
from jax.experimental import pallas as pl
from jax.experimental.pallas import tpu as pltpu


def _mha_kernel(x_ref, wqkv_ref, bqkv_ref, wf_ref, bf_ref, mask_ref, o_ref,
                *, d_model, h):
    x = x_ref[...]                                                   # (N, d_model)

    # Fused Q/K/V projection: one lane-dense (N, d_model) @ (d_model, 3*h*d_model).
    # (1/sqrt(d_model) already folded into the Q columns on the host.)
    qkv = jnp.dot(x, wqkv_ref[...],
                  preferred_element_type=jnp.float32) + bqkv_ref[...]   # (N, 3*h*dm)

    hd = h * d_model
    mask = mask_ref[...]                                             # (N, N) block-diag

    # Statically unrolled head loop; each head handles all slabs at once.
    head_outs = []
    for head in range(h):
        q = qkv[:, head * d_model:(head + 1) * d_model]              # (N, dm), pre-scaled
        k = qkv[:, hd + head * d_model: hd + (head + 1) * d_model]   # (N, dm)
        v = qkv[:, 2 * hd + head * d_model: 2 * hd + (head + 1) * d_model]

        s = jnp.dot(q, k.T, preferred_element_type=jnp.float32) + mask
        s = s - jnp.max(s, axis=-1, keepdims=True)                   # stable softmax
        e = jnp.exp(s)                                               # masked -> exactly 0
        p = e / jnp.sum(e, axis=-1, keepdims=True)                   # softmax(dim=-1)

        head_outs.append(jnp.dot(p, v, preferred_element_type=jnp.float32))

    # Head-major concat (feature index = head*d_model + m) -> one K=256 matmul.
    concat = jnp.concatenate(head_outs, axis=-1)                     # (N, h*dm)
    out = jnp.dot(concat, wf_ref[...],
                  preferred_element_type=jnp.float32) + bf_ref[...]  # (N, dm)

    o_ref[...] = out.astype(o_ref.dtype)


def multi_head_attention(x, params, h):
    B, D1, D2, d_model = x.shape
    wq, bq, wk, bk, wv, bv, wf, bf = params
    hd = h * d_model
    N = B * D1 * D2
    inv_sqrt = 1.0 / math.sqrt(d_model)

    # Torch .view(..., d_model, h) semantics: output feature f = m*h + head.
    # Re-permute so each head's slice is a contiguous d_model-wide column block
    # (column index = head*d_model + m).
    def perm_w(w):   # (d_model, d_model*h) -> (d_model, h*d_model), head-major cols
        return w.reshape(d_model, d_model, h).transpose(0, 2, 1).reshape(d_model, hd)

    def perm_b(b):   # (d_model*h,) -> (h*d_model,), head-major
        return b.reshape(d_model, h).T.reshape(hd)

    # Fold the 1/sqrt(d_model) score scale into the Q projection.
    wqkv = jnp.concatenate([perm_w(wq) * inv_sqrt, perm_w(wk), perm_w(wv)],
                           axis=1)                                       # (dm, 3*h*dm)
    bqkv = jnp.concatenate([perm_b(bq) * inv_sqrt, perm_b(bk), perm_b(bv)]
                           ).reshape(1, 3 * hd)

    # Final linear: torch row index f = m*h + head -> reorder rows to head*d_model + m.
    wf_p = wf.reshape(d_model, h, d_model).transpose(1, 0, 2).reshape(hd, d_model)
    bf_2d = bf.reshape(1, d_model)

    # Block-diagonal additive mask: rows i,j attend only within the same (B,D1) slab.
    slab = jnp.arange(N, dtype=jnp.int32) // D2
    mask = jnp.where(slab[:, None] == slab[None, :], 0.0, -1e30).astype(jnp.float32)

    xf = x.reshape(N, d_model)

    out = pl.pallas_call(
        functools.partial(_mha_kernel, d_model=d_model, h=h),
        out_shape=jax.ShapeDtypeStruct((N, d_model), jnp.float32),
        grid=(1,),
        in_specs=[
            pl.BlockSpec((N, d_model), lambda i: (0, 0)),        # x (all slabs)
            pl.BlockSpec((d_model, 3 * hd), lambda i: (0, 0)),   # W_qkv (resident)
            pl.BlockSpec((1, 3 * hd), lambda i: (0, 0)),         # b_qkv (resident)
            pl.BlockSpec((hd, d_model), lambda i: (0, 0)),       # W_final (resident)
            pl.BlockSpec((1, d_model), lambda i: (0, 0)),        # b_final (resident)
            pl.BlockSpec((N, N), lambda i: (0, 0)),              # block-diag mask
        ],
        out_specs=pl.BlockSpec((N, d_model), lambda i: (0, 0)),
        compiler_params=pltpu.CompilerParams(
            dimension_semantics=("arbitrary",)),
    )(xf, wqkv, bqkv, wf_p, bf_2d, mask)

    return out.reshape(B, D1, D2, d_model)


def reference(x, params, h):
    """Pure-JAX replica of the exact PyTorch forward (for verification)."""
    B, D1, D2, d_model = x.shape
    wq, bq, wk, bk, wv, bv, wf, bf = params
    q = x @ wq + bq
    k = x @ wk + bk
    v = x @ wv + bv
    q = q.reshape(B, D1, D2, d_model, h).transpose(4, 0, 1, 2, 3)
    k = k.reshape(B, D1, D2, d_model, h).transpose(4, 0, 1, 3, 2)
    v = v.reshape(B, D1, D2, d_model, h).transpose(4, 0, 1, 2, 3)
    s = jnp.matmul(q, k) / math.sqrt(d_model)
    p = jax.nn.softmax(s, axis=-1)
    o = jnp.matmul(p, v)
    o = o.transpose(1, 2, 3, 4, 0).reshape(B, D1, D2, d_model * h)
    return o @ wf + bf


if __name__ == "__main__":
    B, D1, D2, d_model, h = 2, 2, 8, 32, 8

    key = jax.random.PRNGKey(0)
    ks = jax.random.split(key, 9)
    scale = 1.0 / math.sqrt(d_model)
    # Deterministic synthetic parameters (JAX convention: W is (in, out)).
    wq = jax.random.normal(ks[0], (d_model, d_model * h), jnp.float32) * scale
    bq = jax.random.normal(ks[1], (d_model * h,), jnp.float32) * 0.1
    wk = jax.random.normal(ks[2], (d_model, d_model * h), jnp.float32) * scale
    bk = jax.random.normal(ks[3], (d_model * h,), jnp.float32) * 0.1
    wv = jax.random.normal(ks[4], (d_model, d_model * h), jnp.float32) * scale
    bv = jax.random.normal(ks[5], (d_model * h,), jnp.float32) * 0.1
    wf = jax.random.normal(ks[6], (d_model * h, d_model), jnp.float32) * scale
    bf = jax.random.normal(ks[7], (d_model,), jnp.float32) * 0.1
    params = (wq, bq, wk, bk, wv, bv, wf, bf)

    x = jax.random.normal(ks[8], (B, D1, D2, d_model), jnp.float32)

    out = multi_head_attention(x, params, h)
    out = jax.block_until_ready(out)

    ref = jax.block_until_ready(reference(x, params, h))
    assert out.shape == (B, D1, D2, d_model)
    assert jnp.allclose(out, ref, atol=1e-4, rtol=1e-4), float(jnp.max(jnp.abs(out - ref)))

    print("KERNEL_OK")
</pallas_src>

<mosaic_0001>
module attributes {stable_mosaic.version = 11 : i64} {
  func.func @_mha_kernel(%arg0: i32, %arg1: memref<32x32xf32, #tpu.memory_space<vmem>>, %arg2: memref<32x768xf32, #tpu.memory_space<vmem>>, %arg3: memref<1x768xf32, #tpu.memory_space<vmem>>, %arg4: memref<256x32xf32, #tpu.memory_space<vmem>>, %arg5: memref<1x32xf32, #tpu.memory_space<vmem>>, %arg6: memref<32x32xf32, #tpu.memory_space<vmem>>, %arg7: memref<32x32xf32, #tpu.memory_space<vmem>>) attributes {dimension_semantics = [#tpu.dimension_semantics<arbitrary>], iteration_bounds = array<i64: 1>, scalar_prefetch = 0 : i64, scratch_operands = 0 : i64, tpu.core_type = #tpu.core_type<tc>, window_params = [{pipeline_mode = #tpu.pipeline_mode<synchronous>, transform_indices = @transform_0, window_bounds = array<i64: 32, 32>}, {pipeline_mode = #tpu.pipeline_mode<synchronous>, transform_indices = @transform_1, window_bounds = array<i64: 32, 768>}, {pipeline_mode = #tpu.pipeline_mode<synchronous>, transform_indices = @transform_2, window_bounds = array<i64: 1, 768>}, {pipeline_mode = #tpu.pipeline_mode<synchronous>, transform_indices = @transform_3, window_bounds = array<i64: 256, 32>}, {pipeline_mode = #tpu.pipeline_mode<synchronous>, transform_indices = @transform_4, window_bounds = array<i64: 1, 32>}, {pipeline_mode = #tpu.pipeline_mode<synchronous>, transform_indices = @transform_5, window_bounds = array<i64: 32, 32>}, {pipeline_mode = #tpu.pipeline_mode<synchronous>, transform_indices = @transform_6, window_bounds = array<i64: 32, 32>}]} {
    %c0 = arith.constant 0 : index
    %c0_0 = arith.constant 0 : index
    %0 = vector.load %arg1[%c0, %c0_0] : memref<32x32xf32, #tpu.memory_space<vmem>>, vector<32x32xf32>
    %c0_1 = arith.constant 0 : index
    %c0_2 = arith.constant 0 : index
    %1 = vector.load %arg2[%c0_1, %c0_2] : memref<32x768xf32, #tpu.memory_space<vmem>>, vector<32x768xf32>
    %cst = arith.constant dense<0.000000e+00> : vector<32x768xf32>
    %2 = tpu.matmul %0, %1, %cst {dimension_numbers = #tpu.dot_dimension_numbers<[1], [0], [0], [1], [0, 0, 1, 1], [], []>} : vector<32x32xf32>, vector<32x768xf32>, vector<32x768xf32> -> vector<32x768xf32>
    %c0_3 = arith.constant 0 : index
    %c0_4 = arith.constant 0 : index
    %3 = vector.load %arg3[%c0_3, %c0_4] : memref<1x768xf32, #tpu.memory_space<vmem>>, vector<1x768xf32>
    %4 = vector.broadcast %3 : vector<1x768xf32> to vector<32x768xf32>
    %5 = arith.addf %2, %4 : vector<32x768xf32>
    %c0_5 = arith.constant 0 : index
    %c0_6 = arith.constant 0 : index
    %6 = vector.load %arg6[%c0_5, %c0_6] : memref<32x32xf32, #tpu.memory_space<vmem>>, vector<32x32xf32>
    %7 = vector.extract_strided_slice %5 {offsets = [0, 0], sizes = [32, 32], strides = [1, 1]} : vector<32x768xf32> to vector<32x32xf32>
    %8 = vector.extract_strided_slice %5 {offsets = [0, 256], sizes = [32, 32], strides = [1, 1]} : vector<32x768xf32> to vector<32x32xf32>
    %9 = vector.extract_strided_slice %5 {offsets = [0, 512], sizes = [32, 32], strides = [1, 1]} : vector<32x768xf32> to vector<32x32xf32>
    %10 = tpu.transpose %8, [1, 0] : vector<32x32xf32> -> vector<32x32xf32>
    %cst_7 = arith.constant dense<0.000000e+00> : vector<32x32xf32>
    %11 = tpu.matmul %7, %10, %cst_7 {dimension_numbers = #tpu.dot_dimension_numbers<[1], [0], [0], [1], [0, 0, 1, 1], [], []>} : vector<32x32xf32>, vector<32x32xf32>, vector<32x32xf32> -> vector<32x32xf32>
    %12 = arith.addf %11, %6 : vector<32x32xf32>
    %cst_8 = arith.constant dense<0xFF800000> : vector<32xf32>
    %13 = vector.multi_reduction <maximumf>, %12, %cst_8 [1] : vector<32x32xf32> to vector<32xf32>
    %14 = vector.shape_cast %13 : vector<32xf32> to vector<32x1xf32>
    %15 = vector.broadcast %14 : vector<32x1xf32> to vector<32x32xf32>
    %16 = arith.subf %12, %15 : vector<32x32xf32>
    %17 = math.exp %16 : vector<32x32xf32>
    %cst_9 = arith.constant dense<0.000000e+00> : vector<32xf32>
    %18 = vector.multi_reduction <add>, %17, %cst_9 [1] : vector<32x32xf32> to vector<32xf32>
    %19 = vector.shape_cast %18 : vector<32xf32> to vector<32x1xf32>
    %20 = vector.broadcast %19 : vector<32x1xf32> to vector<32x32xf32>
    %21 = arith.divf %17, %20 : vector<32x32xf32>
    %cst_10 = arith.constant dense<0.000000e+00> : vector<32x32xf32>
    %22 = tpu.matmul %21, %9, %cst_10 {dimension_numbers = #tpu.dot_dimension_numbers<[1], [0], [0], [1], [0, 0, 1, 1], [], []>} : vector<32x32xf32>, vector<32x32xf32>, vector<32x32xf32> -> vector<32x32xf32>
    %23 = vector.extract_strided_slice %5 {offsets = [0, 32], sizes = [32, 32], strides = [1, 1]} : vector<32x768xf32> to vector<32x32xf32>
    %24 = vector.extract_strided_slice %5 {offsets = [0, 288], sizes = [32, 32], strides = [1, 1]} : vector<32x768xf32> to vector<32x32xf32>
    %25 = vector.extract_strided_slice %5 {offsets = [0, 544], sizes = [32, 32], strides = [1, 1]} : vector<32x768xf32> to vector<32x32xf32>
    %26 = tpu.transpose %24, [1, 0] : vector<32x32xf32> -> vector<32x32xf32>
    %cst_11 = arith.constant dense<0.000000e+00> : vector<32x32xf32>
    %27 = tpu.matmul %23, %26, %cst_11 {dimension_numbers = #tpu.dot_dimension_numbers<[1], [0], [0], [1], [0, 0, 1, 1], [], []>} : vector<32x32xf32>, vector<32x32xf32>, vector<32x32xf32> -> vector<32x32xf32>
    %28 = arith.addf %27, %6 : vector<32x32xf32>
    %cst_12 = arith.constant dense<0xFF800000> : vector<32xf32>
    %29 = vector.multi_reduction <maximumf>, %28, %cst_12 [1] : vector<32x32xf32> to vector<32xf32>
    %30 = vector.shape_cast %29 : vector<32xf32> to vector<32x1xf32>
    %31 = vector.broadcast %30 : vector<32x1xf32> to vector<32x32xf32>
    %32 = arith.subf %28, %31 : vector<32x32xf32>
    %33 = math.exp %32 : vector<32x32xf32>
    %cst_13 = arith.constant dense<0.000000e+00> : vector<32xf32>
    %34 = vector.multi_reduction <add>, %33, %cst_13 [1] : vector<32x32xf32> to vector<32xf32>
    %35 = vector.shape_cast %34 : vector<32xf32> to vector<32x1xf32>
    %36 = vector.broadcast %35 : vector<32x1xf32> to vector<32x32xf32>
    %37 = arith.divf %33, %36 : vector<32x32xf32>
    %cst_14 = arith.constant dense<0.000000e+00> : vector<32x32xf32>
    %38 = tpu.matmul %37, %25, %cst_14 {dimension_numbers = #tpu.dot_dimension_numbers<[1], [0], [0], [1], [0, 0, 1, 1], [], []>} : vector<32x32xf32>, vector<32x32xf32>, vector<32x32xf32> -> vector<32x32xf32>
    %39 = vector.extract_strided_slice %5 {offsets = [0, 64], sizes = [32, 32], strides = [1, 1]} : vector<32x768xf32> to vector<32x32xf32>
    %40 = vector.extract_strided_slice %5 {offsets = [0, 320], sizes = [32, 32], strides = [1, 1]} : vector<32x768xf32> to vector<32x32xf32>
    %41 = vector.extract_strided_slice %5 {offsets = [0, 576], sizes = [32, 32], strides = [1, 1]} : vector<32x768xf32> to vector<32x32xf32>
    %42 = tpu.transpose %40, [1, 0] : vector<32x32xf32> -> vector<32x32xf32>
    %cst_15 = arith.constant dense<0.000000e+00> : vector<32x32xf32>
    %43 = tpu.matmul %39, %42, %cst_15 {dimension_numbers = #tpu.dot_dimension_numbers<[1], [0], [0], [1], [0, 0, 1, 1], [], []>} : vector<32x32xf32>, vector<32x32xf32>, vector<32x32xf32> -> vector<32x32xf32>
    %44 = arith.addf %43, %6 : vector<32x32xf32>
    %cst_16 = arith.constant dense<0xFF800000> : vector<32xf32>
    %45 = vector.multi_reduction <maximumf>, %44, %cst_16 [1] : vector<32x32xf32> to vector<32xf32>
    %46 = vector.shape_cast %45 : vector<32xf32> to vector<32x1xf32>
    %47 = vector.broadcast %46 : vector<32x1xf32> to vector<32x32xf32>
    %48 = arith.subf %44, %47 : vector<32x32xf32>
    %49 = math.exp %48 : vector<32x32xf32>
    %cst_17 = arith.constant dense<0.000000e+00> : vector<32xf32>
    %50 = vector.multi_reduction <add>, %49, %cst_17 [1] : vector<32x32xf32> to vector<32xf32>
    %51 = vector.shape_cast %50 : vector<32xf32> to vector<32x1xf32>
    %52 = vector.broadcast %51 : vector<32x1xf32> to vector<32x32xf32>
    %53 = arith.divf %49, %52 : vector<32x32xf32>
    %cst_18 = arith.constant dense<0.000000e+00> : vector<32x32xf32>
    %54 = tpu.matmul %53, %41, %cst_18 {dimension_numbers = #tpu.dot_dimension_numbers<[1], [0], [0], [1], [0, 0, 1, 1], [], []>} : vector<32x32xf32>, vector<32x32xf32>, vector<32x32xf32> -> vector<32x32xf32>
    %55 = vector.extract_strided_slice %5 {offsets = [0, 96], sizes = [32, 32], strides = [1, 1]} : vector<32x768xf32> to vector<32x32xf32>
    %56 = vector.extract_strided_slice %5 {offsets = [0, 352], sizes = [32, 32], strides = [1, 1]} : vector<32x768xf32> to vector<32x32xf32>
    %57 = vector.extract_strided_slice %5 {offsets = [0, 608], sizes = [32, 32], strides = [1, 1]} : vector<32x768xf32> to vector<32x32xf32>
    %58 = tpu.transpose %56, [1, 0] : vector<32x32xf32> -> vector<32x32xf32>
    %cst_19 = arith.constant dense<0.000000e+00> : vector<32x32xf32>
    %59 = tpu.matmul %55, %58, %cst_19 {dimension_numbers = #tpu.dot_dimension_numbers<[1], [0], [0], [1], [0, 0, 1, 1], [], []>} : vector<32x32xf32>, vector<32x32xf32>, vector<32x32xf32> -> vector<32x32xf32>
    %60 = arith.addf %59, %6 : vector<32x32xf32>
    %cst_20 = arith.constant dense<0xFF800000> : vector<32xf32>
    %61 = vector.multi_reduction <maximumf>, %60, %cst_20 [1] : vector<32x32xf32> to vector<32xf32>
    %62 = vector.shape_cast %61 : vector<32xf32> to vector<32x1xf32>
    %63 = vector.broadcast %62 : vector<32x1xf32> to vector<32x32xf32>
    %64 = arith.subf %60, %63 : vector<32x32xf32>
    %65 = math.exp %64 : vector<32x32xf32>
    %cst_21 = arith.constant dense<0.000000e+00> : vector<32xf32>
    %66 = vector.multi_reduction <add>, %65, %cst_21 [1] : vector<32x32xf32> to vector<32xf32>
    %67 = vector.shape_cast %66 : vector<32xf32> to vector<32x1xf32>
    %68 = vector.broadcast %67 : vector<32x1xf32> to vector<32x32xf32>
    %69 = arith.divf %65, %68 : vector<32x32xf32>
    %cst_22 = arith.constant dense<0.000000e+00> : vector<32x32xf32>
    %70 = tpu.matmul %69, %57, %cst_22 {dimension_numbers = #tpu.dot_dimension_numbers<[1], [0], [0], [1], [0, 0, 1, 1], [], []>} : vector<32x32xf32>, vector<32x32xf32>, vector<32x32xf32> -> vector<32x32xf32>
    %71 = vector.extract_strided_slice %5 {offsets = [0, 128], sizes = [32, 32], strides = [1, 1]} : vector<32x768xf32> to vector<32x32xf32>
    %72 = vector.extract_strided_slice %5 {offsets = [0, 384], sizes = [32, 32], strides = [1, 1]} : vector<32x768xf32> to vector<32x32xf32>
    %73 = vector.extract_strided_slice %5 {offsets = [0, 640], sizes = [32, 32], strides = [1, 1]} : vector<32x768xf32> to vector<32x32xf32>
    %74 = tpu.transpose %72, [1, 0] : vector<32x32xf32> -> vector<32x32xf32>
    %cst_23 = arith.constant dense<0.000000e+00> : vector<32x32xf32>
    %75 = tpu.matmul %71, %74, %cst_23 {dimension_numbers = #tpu.dot_dimension_numbers<[1], [0], [0], [1], [0, 0, 1, 1], [], []>} : vector<32x32xf32>, vector<32x32xf32>, vector<32x32xf32> -> vector<32x32xf32>
    %76 = arith.addf %75, %6 : vector<32x32xf32>
    %cst_24 = arith.constant dense<0xFF800000> : vector<32xf32>
    %77 = vector.multi_reduction <maximumf>, %76, %cst_24 [1] : vector<32x32xf32> to vector<32xf32>
    %78 = vector.shape_cast %77 : vector<32xf32> to vector<32x1xf32>
    %79 = vector.broadcast %78 : vector<32x1xf32> to vector<32x32xf32>
    %80 = arith.subf %76, %79 : vector<32x32xf32>
    %81 = math.exp %80 : vector<32x32xf32>
    %cst_25 = arith.constant dense<0.000000e+00> : vector<32xf32>
    %82 = vector.multi_reduction <add>, %81, %cst_25 [1] : vector<32x32xf32> to vector<32xf32>
    %83 = vector.shape_cast %82 : vector<32xf32> to vector<32x1xf32>
    %84 = vector.broadcast %83 : vector<32x1xf32> to vector<32x32xf32>
    %85 = arith.divf %81, %84 : vector<32x32xf32>
    %cst_26 = arith.constant dense<0.000000e+00> : vector<32x32xf32>
    %86 = tpu.matmul %85, %73, %cst_26 {dimension_numbers = #tpu.dot_dimension_numbers<[1], [0], [0], [1], [0, 0, 1, 1], [], []>} : vector<32x32xf32>, vector<32x32xf32>, vector<32x32xf32> -> vector<32x32xf32>
    %87 = vector.extract_strided_slice %5 {offsets = [0, 160], sizes = [32, 32], strides = [1, 1]} : vector<32x768xf32> to vector<32x32xf32>
    %88 = vector.extract_strided_slice %5 {offsets = [0, 416], sizes = [32, 32], strides = [1, 1]} : vector<32x768xf32> to vector<32x32xf32>
    %89 = vector.extract_strided_slice %5 {offsets = [0, 672], sizes = [32, 32], strides = [1, 1]} : vector<32x768xf32> to vector<32x32xf32>
    %90 = tpu.transpose %88, [1, 0] : vector<32x32xf32> -> vector<32x32xf32>
    %cst_27 = arith.constant dense<0.000000e+00> : vector<32x32xf32>
    %91 = tpu.matmul %87, %90, %cst_27 {dimension_numbers = #tpu.dot_dimension_numbers<[1], [0], [0], [1], [0, 0, 1, 1], [], []>} : vector<32x32xf32>, vector<32x32xf32>, vector<32x32xf32> -> vector<32x32xf32>
    %92 = arith.addf %91, %6 : vector<32x32xf32>
    %cst_28 = arith.constant dense<0xFF800000> : vector<32xf32>
    %93 = vector.multi_reduction <maximumf>, %92, %cst_28 [1] : vector<32x32xf32> to vector<32xf32>
    %94 = vector.shape_cast %93 : vector<32xf32> to vector<32x1xf32>
    %95 = vector.broadcast %94 : vector<32x1xf32> to vector<32x32xf32>
    %96 = arith.subf %92, %95 : vector<32x32xf32>
    %97 = math.exp %96 : vector<32x32xf32>
    %cst_29 = arith.constant dense<0.000000e+00> : vector<32xf32>
    %98 = vector.multi_reduction <add>, %97, %cst_29 [1] : vector<32x32xf32> to vector<32xf32>
    %99 = vector.shape_cast %98 : vector<32xf32> to vector<32x1xf32>
    %100 = vector.broadcast %99 : vector<32x1xf32> to vector<32x32xf32>
    %101 = arith.divf %97, %100 : vector<32x32xf32>
    %cst_30 = arith.constant dense<0.000000e+00> : vector<32x32xf32>
    %102 = tpu.matmul %101, %89, %cst_30 {dimension_numbers = #tpu.dot_dimension_numbers<[1], [0], [0], [1], [0, 0, 1, 1], [], []>} : vector<32x32xf32>, vector<32x32xf32>, vector<32x32xf32> -> vector<32x32xf32>
    %103 = vector.extract_strided_slice %5 {offsets = [0, 192], sizes = [32, 32], strides = [1, 1]} : vector<32x768xf32> to vector<32x32xf32>
    %104 = vector.extract_strided_slice %5 {offsets = [0, 448], sizes = [32, 32], strides = [1, 1]} : vector<32x768xf32> to vector<32x32xf32>
    %105 = vector.extract_strided_slice %5 {offsets = [0, 704], sizes = [32, 32], strides = [1, 1]} : vector<32x768xf32> to vector<32x32xf32>
    %106 = tpu.transpose %104, [1, 0] : vector<32x32xf32> -> vector<32x32xf32>
    %cst_31 = arith.constant dense<0.000000e+00> : vector<32x32xf32>
    %107 = tpu.matmul %103, %106, %cst_31 {dimension_numbers = #tpu.dot_dimension_numbers<[1], [0], [0], [1], [0, 0, 1, 1], [], []>} : vector<32x32xf32>, vector<32x32xf32>, vector<32x32xf32> -> vector<32x32xf32>
    %108 = arith.addf %107, %6 : vector<32x32xf32>
    %cst_32 = arith.constant dense<0xFF800000> : vector<32xf32>
    %109 = vector.multi_reduction <maximumf>, %108, %cst_32 [1] : vector<32x32xf32> to vector<32xf32>
    %110 = vector.shape_cast %109 : vector<32xf32> to vector<32x1xf32>
    %111 = vector.broadcast %110 : vector<32x1xf32> to vector<32x32xf32>
    %112 = arith.subf %108, %111 : vector<32x32xf32>
    %113 = math.exp %112 : vector<32x32xf32>
    %cst_33 = arith.constant dense<0.000000e+00> : vector<32xf32>
    %114 = vector.multi_reduction <add>, %113, %cst_33 [1] : vector<32x32xf32> to vector<32xf32>
    %115 = vector.shape_cast %114 : vector<32xf32> to vector<32x1xf32>
    %116 = vector.broadcast %115 : vector<32x1xf32> to vector<32x32xf32>
    %117 = arith.divf %113, %116 : vector<32x32xf32>
    %cst_34 = arith.constant dense<0.000000e+00> : vector<32x32xf32>
    %118 = tpu.matmul %117, %105, %cst_34 {dimension_numbers = #tpu.dot_dimension_numbers<[1], [0], [0], [1], [0, 0, 1, 1], [], []>} : vector<32x32xf32>, vector<32x32xf32>, vector<32x32xf32> -> vector<32x32xf32>
    %119 = vector.extract_strided_slice %5 {offsets = [0, 224], sizes = [32, 32], strides = [1, 1]} : vector<32x768xf32> to vector<32x32xf32>
    %120 = vector.extract_strided_slice %5 {offsets = [0, 480], sizes = [32, 32], strides = [1, 1]} : vector<32x768xf32> to vector<32x32xf32>
    %121 = vector.extract_strided_slice %5 {offsets = [0, 736], sizes = [32, 32], strides = [1, 1]} : vector<32x768xf32> to vector<32x32xf32>
    %122 = tpu.transpose %120, [1, 0] : vector<32x32xf32> -> vector<32x32xf32>
    %cst_35 = arith.constant dense<0.000000e+00> : vector<32x32xf32>
    %123 = tpu.matmul %119, %122, %cst_35 {dimension_numbers = #tpu.dot_dimension_numbers<[1], [0], [0], [1], [0, 0, 1, 1], [], []>} : vector<32x32xf32>, vector<32x32xf32>, vector<32x32xf32> -> vector<32x32xf32>
    %124 = arith.addf %123, %6 : vector<32x32xf32>
    %cst_36 = arith.constant dense<0xFF800000> : vector<32xf32>
    %125 = vector.multi_reduction <maximumf>, %124, %cst_36 [1] : vector<32x32xf32> to vector<32xf32>
    %126 = vector.shape_cast %125 : vector<32xf32> to vector<32x1xf32>
    %127 = vector.broadcast %126 : vector<32x1xf32> to vector<32x32xf32>
    %128 = arith.subf %124, %127 : vector<32x32xf32>
    %129 = math.exp %128 : vector<32x32xf32>
    %cst_37 = arith.constant dense<0.000000e+00> : vector<32xf32>
    %130 = vector.multi_reduction <add>, %129, %cst_37 [1] : vector<32x32xf32> to vector<32xf32>
    %131 = vector.shape_cast %130 : vector<32xf32> to vector<32x1xf32>
    %132 = vector.broadcast %131 : vector<32x1xf32> to vector<32x32xf32>
    %133 = arith.divf %129, %132 : vector<32x32xf32>
    %cst_38 = arith.constant dense<0.000000e+00> : vector<32x32xf32>
    %134 = tpu.matmul %133, %121, %cst_38 {dimension_numbers = #tpu.dot_dimension_numbers<[1], [0], [0], [1], [0, 0, 1, 1], [], []>} : vector<32x32xf32>, vector<32x32xf32>, vector<32x32xf32> -> vector<32x32xf32>
    %135 = tpu.concatenate %22, %38, %54, %70, %86, %102, %118, %134 in 1 : vector<32x32xf32>, vector<32x32xf32>, vector<32x32xf32>, vector<32x32xf32>, vector<32x32xf32>, vector<32x32xf32>, vector<32x32xf32>, vector<32x32xf32> -> vector<32x256xf32>
    %c0_39 = arith.constant 0 : index
    %c0_40 = arith.constant 0 : index
    %136 = vector.load %arg4[%c0_39, %c0_40] : memref<256x32xf32, #tpu.memory_space<vmem>>, vector<256x32xf32>
    %cst_41 = arith.constant dense<0.000000e+00> : vector<32x32xf32>
    %137 = tpu.matmul %135, %136, %cst_41 {dimension_numbers = #tpu.dot_dimension_numbers<[1], [0], [0], [1], [0, 0, 1, 1], [], []>} : vector<32x256xf32>, vector<256x32xf32>, vector<32x32xf32> -> vector<32x32xf32>
    %c0_42 = arith.constant 0 : index
    %c0_43 = arith.constant 0 : index
    %138 = vector.load %arg5[%c0_42, %c0_43] : memref<1x32xf32, #tpu.memory_space<vmem>>, vector<1x32xf32>
    %139 = vector.broadcast %138 : vector<1x32xf32> to vector<32x32xf32>
    %140 = arith.addf %137, %139 : vector<32x32xf32>
    %c0_44 = arith.constant 0 : index
    %c0_45 = arith.constant 0 : index
    %141 = vector.load %arg7[%c0_44, %c0_45] : memref<32x32xf32, #tpu.memory_space<vmem>>, vector<32x32xf32>
    tpu.vector_store %arg7[%c0_44, %c0_45], %140 {strides = array<i32>} : memref<32x32xf32, #tpu.memory_space<vmem>>, vector<32x32xf32>,
    return
  }
  func.func @transform_0(%arg0: i32) -> (i32, i32) {
    %c0_i32 = arith.constant 0 : i32
    %c0_i32_0 = arith.constant 0 : i32
    %c0_i32_1 = arith.constant 0 : i32
    return %c0_i32, %c0_i32_0 : i32, i32
  }
  func.func @transform_1(%arg0: i32) -> (i32, i32) {
    %c0_i32 = arith.constant 0 : i32
    %c0_i32_0 = arith.constant 0 : i32
    %c0_i32_1 = arith.constant 0 : i32
    return %c0_i32, %c0_i32_0 : i32, i32
  }
  func.func @transform_2(%arg0: i32) -> (i32, i32) {
    %c0_i32 = arith.constant 0 : i32
    %c0_i32_0 = arith.constant 0 : i32
    %c0_i32_1 = arith.constant 0 : i32
    return %c0_i32, %c0_i32_0 : i32, i32
  }
  func.func @transform_3(%arg0: i32) -> (i32, i32) {
    %c0_i32 = arith.constant 0 : i32
    %c0_i32_0 = arith.constant 0 : i32
    %c0_i32_1 = arith.constant 0 : i32
    return %c0_i32, %c0_i32_0 : i32, i32
  }
  func.func @transform_4(%arg0: i32) -> (i32, i32) {
    %c0_i32 = arith.constant 0 : i32
    %c0_i32_0 = arith.constant 0 : i32
    %c0_i32_1 = arith.constant 0 : i32
    return %c0_i32, %c0_i32_0 : i32, i32
  }
  func.func @transform_5(%arg0: i32) -> (i32, i32) {
    %c0_i32 = arith.constant 0 : i32
    %c0_i32_0 = arith.constant 0 : i32
    %c0_i32_1 = arith.constant 0 : i32
    return %c0_i32, %c0_i32_0 : i32, i32
  }
  func.func @transform_6(%arg0: i32) -> (i32, i32) {
    %c0_i32 = arith.constant 0 : i32
    %c0_i32_0 = arith.constant 0 : i32
    %c0_i32_1 = arith.constant 0 : i32
    return %c0_i32, %c0_i32_0 : i32, i32
  }
}

</mosaic_0001>

<llo_original>
// kernel: tpu_custom_call.1
$region0: #{tpu_custom_call.1}
  #allocation0 [shape = 'u32[]', space=smem, size = 0x4, offset = 0x4, fixed_abs, tag = 'smem constant byte address 0x4 - core index']
  #allocation1 [shape = 'u32[144,128]{1,0:T(1,128)}', space=vmem, size = 0x12000, scoped, tag = 'internal scratch']
  %s0 = inlined_call_operand.vmem [shape: f32[32,32], index: 0, kind: input, shape index: {}]
  %s1 = inlined_call_operand.vmem [shape: f32[32,768], index: 1, kind: input, shape index: {}]
  %s2 = inlined_call_operand.vmem [shape: f32[1,768], index: 2, kind: input, shape index: {}]
  %s3 = inlined_call_operand.vmem [shape: f32[256,32], index: 3, kind: input, shape index: {}]
  %s4 = inlined_call_operand.vmem [shape: f32[1,32], index: 4, kind: input, shape index: {}]
  %s5 = inlined_call_operand.vmem [shape: f32[32,32], index: 5, kind: input, shape index: {}]
  %s6 = inlined_call_operand.hbm [shape: f32[32,32], index: 6, kind: output, shape index: {}]
  %s7 = sld [smem:[#allocation0]]
  $region34: #{tpu_custom_call.1} parent=0
    _
  %s9 = ssub.s32 1, %s7
  %s10 = scalar_select 0, %s9, %s7
  $region1: #{tpu_custom_call.1} parent=0
    #allocation2 [shape = 'u8[16384]{0}', space=vmem, size = 0x4000, scoped, tag = 'output window, operand 0, single buffered']
    #allocation3 [shape = 's32[1]{0}', space=sflag, size = 0x4, scoped, tag = 'scoped memory for tpu_custom_call.1']
    %11 = vsyncpa [#allocation3], 0
    // Predicated region
    $region2: #{tpu_custom_call.1} parent=1 // pred_check
      _
    $region3: #{tpu_custom_call.1} parent=1 // pred_check_branch
      %13 = sbr.rel (0) target = $region5
    $region4: #{tpu_custom_call.1} parent=1 // pred_region
      _
    $region5: #{tpu_custom_call.1} parent=1 // pred_fallthru
      _
    // Predicated region
    $region6: #{tpu_custom_call.1} parent=1 // pred_check
      _
    $region7: #{tpu_custom_call.1} parent=1 // pred_check_branch
      %15 = sbr.rel (0) target = $region9
    $region8: #{tpu_custom_call.1} parent=1 // pred_region
      _
    $region9: #{tpu_custom_call.1} parent=1 // pred_fallthru
      _
    // Predicated region
    $region10: #{tpu_custom_call.1} parent=1 // pred_check
      _
    $region11: #{tpu_custom_call.1} parent=1 // pred_check_branch
      %17 = sbr.rel (0) target = $region13
    $region12: #{tpu_custom_call.1} parent=1 // pred_region
      _
    $region13: #{tpu_custom_call.1} parent=1 // pred_fallthru
      _
    // Predicated region
    $region14: #{tpu_custom_call.1} parent=1 // pred_check
      _
    $region15: #{tpu_custom_call.1} parent=1 // pred_check_branch
      %19 = sbr.rel (0) target = $region17
    $region16: #{tpu_custom_call.1} parent=1 // pred_region
      _
    $region17: #{tpu_custom_call.1} parent=1 // pred_fallthru
      _
    // Predicated region
    $region18: #{tpu_custom_call.1} parent=1 // pred_check
      _
    $region19: #{tpu_custom_call.1} parent=1 // pred_check_branch
      %21 = sbr.rel (0) target = $region21
    $region20: #{tpu_custom_call.1} parent=1 // pred_region
      _
    $region21: #{tpu_custom_call.1} parent=1 // pred_fallthru
      _
    // Predicated region
    $region22: #{tpu_custom_call.1} parent=1 // pred_check
      _
    $region23: #{tpu_custom_call.1} parent=1 // pred_check_branch
      %23 = sbr.rel (0) target = $region25
    $region24: #{tpu_custom_call.1} parent=1 // pred_region
      _
    $region25: #{tpu_custom_call.1} parent=1 // pred_fallthru
      _
    %v24 = vld [vmem:[%s0] sm:$0xff]
    %v25 = vld [vmem:[%s0 + $0x8] sm:$0xff]
    %v26 = vld [vmem:[%s0 + $0x10] sm:$0xff]
    %v27 = vld [vmem:[%s0 + $0x18] sm:$0xff]
    %v28 = vld [vmem:[%s1] sm:$0xff]
    %v29 = vld [vmem:[%s1 + $0x8] sm:$0xff]
    %v30 = vld [vmem:[%s1 + $0x10] sm:$0xff]
    %v31 = vld [vmem:[%s1 + $0x18] sm:$0xff]
    %v32 = vld [vmem:[%s1 + $0x20] sm:$0xff]
    %v33 = vld [vmem:[%s1 + $0x28] sm:$0xff]
    %v34 = vld [vmem:[%s1 + $0x30] sm:$0xff]
    %v35 = vld [vmem:[%s1 + $0x38] sm:$0xff]
    %v36 = vld [vmem:[%s1 + $0x40] sm:$0xff]
    %v37 = vld [vmem:[%s1 + $0x48] sm:$0xff]
    %v38 = vld [vmem:[%s1 + $0x50] sm:$0xff]
    %v39 = vld [vmem:[%s1 + $0x58] sm:$0xff]
    %v40 = vld [vmem:[%s1 + $0x60] sm:$0xff]
    %v41 = vld [vmem:[%s1 + $0x68] sm:$0xff]
    %v42 = vld [vmem:[%s1 + $0x70] sm:$0xff]
    %v43 = vld [vmem:[%s1 + $0x78] sm:$0xff]
    %v44 = vld [vmem:[%s1 + $0x80] sm:$0xff]
    %v45 = vld [vmem:[%s1 + $0x88] sm:$0xff]
    %v46 = vld [vmem:[%s1 + $0x90] sm:$0xff]
    %v47 = vld [vmem:[%s1 + $0x98] sm:$0xff]
    %v48 = vld [vmem:[%s1 + $0xa0] sm:$0xff]
    %v49 = vld [vmem:[%s1 + $0xa8] sm:$0xff]
    %v50 = vld [vmem:[%s1 + $0xb0] sm:$0xff]
    %v51 = vld [vmem:[%s1 + $0xb8] sm:$0xff]
    %v52 = vld [vmem:[%s2] sm:$0x3f]
    %v54 = vlaneseq
    %v55 = vshrl.u32 %v54, 7
    %v56 = vsub.s32 0, %v55
    %v57 = vrot.slane %v52, %v56
    %v58 = vlaneseq
    %v59 = vshrl.u32 %v58, 7
    %v60 = vsub.s32 1, %v59
    %v61 = vrot.slane %v52, %v60
    %v62 = vlaneseq
    %v63 = vshrl.u32 %v62, 7
    %v64 = vsub.s32 2, %v63
    %v65 = vrot.slane %v52, %v64
    %v66 = vlaneseq
    %v67 = vshrl.u32 %v66, 7
    %v68 = vsub.s32 3, %v67
    %v69 = vrot.slane %v52, %v68
    %v70 = vlaneseq
    %v71 = vshrl.u32 %v70, 7
    %v72 = vsub.s32 4, %v71
    %v73 = vrot.slane %v52, %v72
    %v74 = vlaneseq
    %v75 = vshrl.u32 %v74, 7
    %v76 = vsub.s32 5, %v75
    %v77 = vrot.slane %v52, %v76
    %vm84 = vcmask 261120
    %v86 = vsel %vm84, %v24, 0
    %v89 = vsel %vm84, %v25, 0
    %v92 = vsel %vm84, %v26, 0
    %v95 = vsel %vm84, %v27, 0
    %97 = vmatprep.subr.mxu0 %v29
    %98 = vmatpush1.msra.mxu0 %v28
    %99 = vmatprep.subr.mxu0 %v35
    %100 = vmatpush1.msra.mxu0 %v34
    %101 = vmatprep.subr.mxu0 %v41
    %102 = vmatpush1.msra.mxu0 %v40
    %103 = vmatprep.subr.mxu0 %v47
    %104 = vmatpush1.msra.mxu0 %v46
    %105 = vmatprep.subr.mxu0 0.0
    %106 = vmatpush1.msra.mxu0 0.0
    %107 = vmatprep.subr.mxu0 0.0
    %108 = vmatpush1.msra.mxu0 0.0
    %109 = vmatprep.subr.mxu0 0.0
    %110 = vmatpush1.msra.mxu0 0.0
    %111 = vmatprep.subr.mxu0 0.0
    %112 = vmatpush1.msra.mxu0 0.0
    %113 = vmatprep.subr.mxu0 0.0
    %114 = vmatpush1.msra.mxu0 0.0
    %115 = vmatprep.subr.mxu0 0.0
    %116 = vmatpush1.msra.mxu0 0.0
    %117 = vmatprep.subr.mxu0 0.0
    %118 = vmatpush1.msra.mxu0 0.0
    %119 = vmatprep.subr.mxu0 0.0
    %120 = vmatpush1.msra.mxu0 0.0
    %121 = vmatprep.subr.mxu0 0.0
    %122 = vmatpush1.msra.mxu0 0.0
    %123 = vmatprep.subr.mxu0 0.0
    %124 = vmatpush1.msra.mxu0 0.0
    %125 = vmatprep.subr.mxu0 0.0
    %126 = vmatpush1.msra.mxu0 0.0
    %127 = vmatprep.subr.mxu0 0.0
    %128 = vmatpush1.msra.mxu0 0.0
    %129 = vmatprep.subr.mxu0 0.0
    %130 = vmatpush1.msra.mxu0 0.0
    %131 = vmatprep.subr.mxu0 0.0
    %132 = vmatpush1.msra.mxu0 0.0
    %133 = vmatprep.subr.mxu0 0.0
    %134 = vmatpush1.msra.mxu0 0.0
    %135 = vmatprep.subr.mxu0 0.0
    %136 = vmatpush1.msra.mxu0 0.0
    %137 = vmatprep.subr.mxu0 0.0
    %138 = vmatpush1.msra.mxu0 0.0
    %139 = vmatprep.subr.mxu0 0.0
    %140 = vmatpush1.msra.mxu0 0.0
    %141 = vmatprep.subr.mxu0 0.0
    %142 = vmatpush1.msra.mxu0 0.0
    %143 = vmatprep.subr.mxu0 0.0
    %144 = vmatpush1.msra.mxu0 0.0
    %145 = vmatprep.subr.mxu0 0.0
    %146 = vmatpush1.msra.mxu0 0.0
    %147 = vmatprep.subr.mxu0 0.0
    %148 = vmatpush1.msra.mxu0 0.0
    %149 = vmatprep.subr.mxu0 0.0
    %150 = vmatpush1.msra.mxu0 0.0
    %151 = vmatprep.subr.mxu0 0.0
    %152 = vmatpush1.msra.mxu0 0.0
    %153 = vmatprep.subr.mxu0 0.0
    %154 = vmatpush1.msra.mxu0 0.0
    %155 = vmatprep.subr.mxu0 0.0
    %156 = vmatpush1.msra.mxu0 0.0
    %157 = vmatprep.subr.mxu0 0.0
    %158 = vmatpush1.msra.mxu0 0.0
    %159 = vmatprep.subr.mxu0 0.0
    %160 = vmatpush1.msra.mxu0 0.0
    %161 = vmatprep.mubr.f32.mxu0 0.0
    %162 = vmatmul.mubr.f32.gmra.mrb[0].mxu0 %v86
    %v163 = vpop.f32.mrb[0].mxu0
    %v164 = vadd.f32 %v57, %v163
    %v165 = vpop.f32.mrb[0].mxu0
    %v166 = vadd.f32 %v61, %v165
    %167 = vmatprep.mubr.f32.mxu0 0.0
    %168 = vmatmul.mubr.f32.gmra.mrb[0].mxu0 %v89
    %v169 = vpop.f32.mrb[0].mxu0
    %v170 = vadd.f32 %v57, %v169
    %v171 = vpop.f32.mrb[0].mxu0
    %v172 = vadd.f32 %v61, %v171
    %173 = vmatprep.mubr.f32.mxu0 0.0
    %174 = vmatmul.mubr.f32.gmra.mrb[0].mxu0 %v92
    %v175 = vpop.f32.mrb[0].mxu0
    %v176 = vadd.f32 %v57, %v175
    %v177 = vpop.f32.mrb[0].mxu0
    %v178 = vadd.f32 %v61, %v177
    %179 = vmatprep.mubr.f32.mxu0 0.0
    %180 = vmatmul.mubr.f32.gmra.mrb[0].mxu0 %v95
    %v181 = vpop.f32.mrb[0].mxu0
    %v182 = vadd.f32 %v57, %v181
    %v183 = vpop.f32.mrb[0].mxu0
    %v184 = vadd.f32 %v61, %v183
    %185 = vdwg.mxu0
    %186 = vmatprep.subr.mxu0 %v31
    %187 = vmatpush1.msra.mxu0 %v30
    %188 = vmatprep.subr.mxu0 %v37
    %189 = vmatpush1.msra.mxu0 %v36
    %190 = vmatprep.subr.mxu0 %v43
    %191 = vmatpush1.msra.mxu0 %v42
    %192 = vmatprep.subr.mxu0 %v49
    %193 = vmatpush1.msra.mxu0 %v48
    %194 = vmatprep.subr.mxu0 0.0
    %195 = vmatpush1.msra.mxu0 0.0
    %196 = vmatprep.subr.mxu0 0.0
    %197 = vmatpush1.msra.mxu0 0.0
    %198 = vmatprep.subr.mxu0 0.0
    %199 = vmatpush1.msra.mxu0 0.0
    %200 = vmatprep.subr.mxu0 0.0
    %201 = vmatpush1.msra.mxu0 0.0
    %202 = vmatprep.subr.mxu0 0.0
    %203 = vmatpush1.msra.mxu0 0.0
    %204 = vmatprep.subr.mxu0 0.0
    %205 = vmatpush1.msra.mxu0 0.0
    %206 = vmatprep.subr.mxu0 0.0
    %207 = vmatpush1.msra.mxu0 0.0
    %208 = vmatprep.subr.mxu0 0.0
    %209 = vmatpush1.msra.mxu0 0.0
    %210 = vmatprep.subr.mxu0 0.0
    %211 = vmatpush1.msra.mxu0 0.0
    %212 = vmatprep.subr.mxu0 0.0
    %213 = vmatpush1.msra.mxu0 0.0
    %214 = vmatprep.subr.mxu0 0.0
    %215 = vmatpush1.msra.mxu0 0.0
    %216 = vmatprep.subr.mxu0 0.0
    %217 = vmatpush1.msra.mxu0 0.0
    %218 = vmatprep.subr.mxu0 0.0
    %219 = vmatpush1.msra.mxu0 0.0
    %220 = vmatprep.subr.mxu0 0.0
    %221 = vmatpush1.msra.mxu0 0.0
    %222 = vmatprep.subr.mxu0 0.0
    %223 = vmatpush1.msra.mxu0 0.0
    %224 = vmatprep.subr.mxu0 0.0
    %225 = vmatpush1.msra.mxu0 0.0
    %226 = vmatprep.subr.mxu0 0.0
    %227 = vmatpush1.msra.mxu0 0.0
    %228 = vmatprep.subr.mxu0 0.0
    %229 = vmatpush1.msra.mxu0 0.0
    %230 = vmatprep.subr.mxu0 0.0
    %231 = vmatpush1.msra.mxu0 0.0
    %232 = vmatprep.subr.mxu0 0.0
    %233 = vmatpush1.msra.mxu0 0.0
    %234 = vmatprep.subr.mxu0 0.0
    %235 = vmatpush1.msra.mxu0 0.0
    %236 = vmatprep.subr.mxu0 0.0
    %237 = vmatpush1.msra.mxu0 0.0
    %238 = vmatprep.subr.mxu0 0.0
    %239 = vmatpush1.msra.mxu0 0.0
    %240 = vmatprep.subr.mxu0 0.0
    %241 = vmatpush1.msra.mxu0 0.0
    %242 = vmatprep.subr.mxu0 0.0
    %243 = vmatpush1.msra.mxu0 0.0
    %244 = vmatprep.subr.mxu0 0.0
    %245 = vmatpush1.msra.mxu0 0.0
    %246 = vmatprep.subr.mxu0 0.0
    %247 = vmatpush1.msra.mxu0 0.0
    %248 = vmatprep.subr.mxu0 0.0
    %249 = vmatpush1.msra.mxu0 0.0
    %250 = vmatprep.mubr.f32.mxu0 0.0
    %251 = vmatmul.mubr.f32.gmra.mrb[0].mxu0 %v86
    %v252 = vpop.f32.mrb[0].mxu0
    %v253 = vadd.f32 %v65, %v252
    %v254 = vpop.f32.mrb[0].mxu0
    %v255 = vadd.f32 %v69, %v254
    %256 = vmatprep.mubr.f32.mxu0 0.0
    %257 = vmatmul.mubr.f32.gmra.mrb[0].mxu0 %v89
    %v258 = vpop.f32.mrb[0].mxu0
    %v259 = vadd.f32 %v65, %v258
    %v260 = vpop.f32.mrb[0].mxu0
    %v261 = vadd.f32 %v69, %v260
    %262 = vmatprep.mubr.f32.mxu0 0.0
    %263 = vmatmul.mubr.f32.gmra.mrb[0].mxu0 %v92
    %v264 = vpop.f32.mrb[0].mxu0
    %v265 = vadd.f32 %v65, %v264
    %v266 = vpop.f32.mrb[0].mxu0
    %v267 = vadd.f32 %v69, %v266
    %268 = vmatprep.mubr.f32.mxu0 0.0
    %269 = vmatmul.mubr.f32.gmra.mrb[0].mxu0 %v95
    %v270 = vpop.f32.mrb[0].mxu0
    %v271 = vadd.f32 %v65, %v270
    %v272 = vpop.f32.mrb[0].mxu0
    %v273 = vadd.f32 %v69, %v272
    %274 = vdwg.mxu0
    %275 = vmatprep.subr.mxu0 %v33
    %276 = vmatpush1.msra.mxu0 %v32
    %277 = vmatprep.subr.mxu0 %v39
    %278 = vmatpush1.msra.mxu0 %v38
    %279 = vmatprep.subr.mxu0 %v45
    %280 = vmatpush1.msra.mxu0 %v44
    %281 = vmatprep.subr.mxu0 %v51
    %282 = vmatpush1.msra.mxu0 %v50
    %283 = vmatprep.subr.mxu0 0.0
    %284 = vmatpush1.msra.mxu0 0.0
    %285 = vmatprep.subr.mxu0 0.0
    %286 = vmatpush1.msra.mxu0 0.0
    %287 = vmatprep.subr.mxu0 0.0
    %288 = vmatpush1.msra.mxu0 0.0
    %289 = vmatprep.subr.mxu0 0.0
    %290 = vmatpush1.msra.mxu0 0.0
    %291 = vmatprep.subr.mxu0 0.0
    %292 = vmatpush1.msra.mxu0 0.0
    %293 = vmatprep.subr.mxu0 0.0
    %294 = vmatpush1.msra.mxu0 0.0
    %295 = vmatprep.subr.mxu0 0.0
    %296 = vmatpush1.msra.mxu0 0.0
    %297 = vmatprep.subr.mxu0 0.0
    %298 = vmatpush1.msra.mxu0 0.0
    %299 = vmatprep.subr.mxu0 0.0
    %300 = vmatpush1.msra.mxu0 0.0
    %301 = vmatprep.subr.mxu0 0.0
    %302 = vmatpush1.msra.mxu0 0.0
    %303 = vmatprep.subr.mxu0 0.0
    %304 = vmatpush1.msra.mxu0 0.0
    %305 = vmatprep.subr.mxu0 0.0
    %306 = vmatpush1.msra.mxu0 0.0
    %307 = vmatprep.subr.mxu0 0.0
    %308 = vmatpush1.msra.mxu0 0.0
    %309 = vmatprep.subr.mxu0 0.0
    %310 = vmatpush1.msra.mxu0 0.0
    %311 = vmatprep.subr.mxu0 0.0
    %312 = vmatpush1.msra.mxu0 0.0
    %313 = vmatprep.subr.mxu0 0.0
    %314 = vmatpush1.msra.mxu0 0.0
    %315 = vmatprep.subr.mxu0 0.0
    %316 = vmatpush1.msra.mxu0 0.0
    %317 = vmatprep.subr.mxu0 0.0
    %318 = vmatpush1.msra.mxu0 0.0
    %319 = vmatprep.subr.mxu0 0.0
    %320 = vmatpush1.msra.mxu0 0.0
    %321 = vmatprep.subr.mxu0 0.0
    %322 = vmatpush1.msra.mxu0 0.0
    %323 = vmatprep.subr.mxu0 0.0
    %324 = vmatpush1.msra.mxu0 0.0
    %325 = vmatprep.subr.mxu0 0.0
    %326 = vmatpush1.msra.mxu0 0.0
    %327 = vmatprep.subr.mxu0 0.0
    %328 = vmatpush1.msra.mxu0 0.0
    %329 = vmatprep.subr.mxu0 0.0
    %330 = vmatpush1.msra.mxu0 0.0
    %331 = vmatprep.subr.mxu0 0.0
    %332 = vmatpush1.msra.mxu0 0.0
    %333 = vmatprep.subr.mxu0 0.0
    %334 = vmatpush1.msra.mxu0 0.0
    %335 = vmatprep.subr.mxu0 0.0
    %336 = vmatpush1.msra.mxu0 0.0
    %337 = vmatprep.subr.mxu0 0.0
    %338 = vmatpush1.msra.mxu0 0.0
    %339 = vmatprep.mubr.f32.mxu0 0.0
    %340 = vmatmul.mubr.f32.gmra.mrb[0].mxu0 %v86
    %v341 = vpop.f32.mrb[0].mxu0
    %v342 = vadd.f32 %v73, %v341
    %v343 = vpop.f32.mrb[0].mxu0
    %v344 = vadd.f32 %v77, %v343
    %345 = vmatprep.mubr.f32.mxu0 0.0
    %346 = vmatmul.mubr.f32.gmra.mrb[0].mxu0 %v89
    %v347 = vpop.f32.mrb[0].mxu0
    %v348 = vadd.f32 %v73, %v347
    %v349 = vpop.f32.mrb[0].mxu0
    %v350 = vadd.f32 %v77, %v349
    %351 = vmatprep.mubr.f32.mxu0 0.0
    %352 = vmatmul.mubr.f32.gmra.mrb[0].mxu0 %v92
    %v353 = vpop.f32.mrb[0].mxu0
    %v354 = vadd.f32 %v73, %v353
    %v355 = vpop.f32.mrb[0].mxu0
    %v356 = vadd.f32 %v77, %v355
    %357 = vmatprep.mubr.f32.mxu0 0.0
    %358 = vmatmul.mubr.f32.gmra.mrb[0].mxu0 %v95
    %v359 = vpop.f32.mrb[0].mxu0
    %v360 = vadd.f32 %v73, %v359
    %v361 = vpop.f32.mrb[0].mxu0
    %v362 = vadd.f32 %v77, %v361
    %363 = vdwg.mxu0
    %v364 = vld [vmem:[%s5] sm:$0xff]
    %v365 = vld [vmem:[%s5 + $0x8] sm:$0xff]
    %v366 = vld [vmem:[%s5 + $0x10] sm:$0xff]
    %v367 = vld [vmem:[%s5 + $0x18] sm:$0xff]
    %v369 = vsel %vm84, %v164, 0
    %v372 = vsel %vm84, %v170, 0
    %v375 = vsel %vm84, %v176, 0
    %v378 = vsel %vm84, %v182, 0
    %v381 = vsel %vm84, %v253, 0
    %v384 = vsel %vm84, %v259, 0
    %v387 = vsel %vm84, %v265, 0
    %v390 = vsel %vm84, %v271, 0
    %392 = vmatprep.subr.mxu0 0.0
    %393 = vmatpush1.xpose.msra.mxu0 %v381
    %394 = vmatprep.subr.mxu0 0.0
    %395 = vmatpush1.xpose.msra.mxu0 %v384
    %396 = vmatprep.subr.mxu0 0.0
    %397 = vmatpush1.xpose.msra.mxu0 %v387
    %398 = vmatprep.subr.mxu0 0.0
    %399 = vmatpush1.xpose.msra.mxu0 %v390
    %400 = vmatprep.subr.mxu0 0.0
    %401 = vmatpush1.xpose.msra.mxu0 0.0
    %402 = vmatprep.subr.mxu0 0.0
    %403 = vmatpush1.xpose.msra.mxu0 0.0
    %404 = vmatprep.subr.mxu0 0.0
    %405 = vmatpush1.xpose.msra.mxu0 0.0
    %406 = vmatprep.subr.mxu0 0.0
    %407 = vmatpush1.xpose.msra.mxu0 0.0
    %408 = vmatprep.subr.mxu0 0.0
    %409 = vmatpush1.xpose.msra.mxu0 0.0
    %410 = vmatprep.subr.mxu0 0.0
    %411 = vmatpush1.xpose.msra.mxu0 0.0
    %412 = vmatprep.subr.mxu0 0.0
    %413 = vmatpush1.xpose.msra.mxu0 0.0
    %414 = vmatprep.subr.mxu0 0.0
    %415 = vmatpush1.xpose.msra.mxu0 0.0
    %416 = vmatprep.subr.mxu0 0.0
    %417 = vmatpush1.xpose.msra.mxu0 0.0
    %418 = vmatprep.subr.mxu0 0.0
    %419 = vmatpush1.xpose.msra.mxu0 0.0
    %420 = vmatprep.subr.mxu0 0.0
    %421 = vmatpush1.xpose.msra.mxu0 0.0
    %422 = vmatprep.subr.mxu0 0.0
    %423 = vmatpush1.xpose.msra.mxu0 0.0
    %424 = vmatprep.subr.mxu0 0.0
    %425 = vmatpush1.xpose.msra.mxu0 0.0
    %426 = vmatprep.subr.mxu0 0.0
    %427 = vmatpush1.xpose.msra.mxu0 0.0
    %428 = vmatprep.subr.mxu0 0.0
    %429 = vmatpush1.xpose.msra.mxu0 0.0
    %430 = vmatprep.subr.mxu0 0.0
    %431 = vmatpush1.xpose.msra.mxu0 0.0
    %432 = vmatprep.subr.mxu0 0.0
    %433 = vmatpush1.xpose.msra.mxu0 0.0
    %434 = vmatprep.subr.mxu0 0.0
    %435 = vmatpush1.xpose.msra.mxu0 0.0
    %436 = vmatprep.subr.mxu0 0.0
    %437 = vmatpush1.xpose.msra.mxu0 0.0
    %438 = vmatprep.subr.mxu0 0.0
    %439 = vmatpush1.xpose.msra.mxu0 0.0
    %440 = vmatprep.subr.mxu0 0.0
    %441 = vmatpush1.xpose.msra.mxu0 0.0
    %442 = vmatprep.subr.mxu0 0.0
    %443 = vmatpush1.xpose.msra.mxu0 0.0
    %444 = vmatprep.subr.mxu0 0.0
    %445 = vmatpush1.xpose.msra.mxu0 0.0
    %446 = vmatprep.subr.mxu0 0.0
    %447 = vmatpush1.xpose.msra.mxu0 0.0
    %448 = vmatprep.subr.mxu0 0.0
    %449 = vmatpush1.xpose.msra.mxu0 0.0
    %450 = vmatprep.subr.mxu0 0.0
    %451 = vmatpush1.xpose.msra.mxu0 0.0
    %452 = vmatprep.subr.mxu0 0.0
    %453 = vmatpush1.xpose.msra.mxu0 0.0
    %454 = vmatprep.subr.mxu0 0.0
    %455 = vmatpush1.xpose.msra.mxu0 0.0
    %456 = vmatprep.mubr.f32.mxu0 0.0
    %457 = vmatmul.mubr.f32.gmra.mrb[0].mxu0 %v369
    %v458 = vpop.f32.mrb[0].mxu0
    %v459 = vadd.f32 %v364, %v458
    %v460 = vpop.f32.mrb[0].mxu0
    %461 = vmatprep.mubr.f32.mxu0 0.0
    %462 = vmatmul.mubr.f32.gmra.mrb[0].mxu0 %v372
    %v463 = vpop.f32.mrb[0].mxu0
    %v464 = vadd.f32 %v365, %v463
    %v465 = vpop.f32.mrb[0].mxu0
    %466 = vmatprep.mubr.f32.mxu0 0.0
    %467 = vmatmul.mubr.f32.gmra.mrb[0].mxu0 %v375
    %v468 = vpop.f32.mrb[0].mxu0
    %v469 = vadd.f32 %v366, %v468
    %v470 = vpop.f32.mrb[0].mxu0
    %471 = vmatprep.mubr.f32.mxu0 0.0
    %472 = vmatmul.mubr.f32.gmra.mrb[0].mxu0 %v378
    %v473 = vpop.f32.mrb[0].mxu0
    %v474 = vadd.f32 %v367, %v473
    %v475 = vpop.f32.mrb[0].mxu0
    %476 = vdwg.mxu0
    %v477 = vsel %vm84, %v459, -inf
    %478 = vmax.xlane.f32.xlu0 %v477
    %v479 = vpop.xlane.xlu0 %478
    %v480 = vsel %vm84, %v464, -inf
    %481 = vmax.xlane.f32.xlu0 %v480
    %v482 = vpop.xlane.xlu0 %481
    %v483 = vsel %vm84, %v469, -inf
    %484 = vmax.xlane.f32.xlu0 %v483
    %v485 = vpop.xlane.xlu0 %484
    %v486 = vsel %vm84, %v474, -inf
    %487 = vmax.xlane.f32.xlu0 %v486
    %v488 = vpop.xlane.xlu0 %487
    %v489 = vsub.f32 %v459, %v479
    %v490 = vsub.f32 %v464, %v482
    %v491 = vsub.f32 %v469, %v485
    %v492 = vsub.f32 %v474, %v488
    %v493 = vmul.f32 %v489, 1.442695
    %v494 = vpow.pop %v493
    %v495 = vmul.f32 %v490, 1.442695
    %v496 = vpow.pop %v495
    %v497 = vmul.f32 %v491, 1.442695
    %v498 = vpow.pop %v497
    %v499 = vmul.f32 %v492, 1.442695
    %v500 = vpow.pop %v499
    %v501 = vsel %vm84, %v494, 0.0
    %502 = vadd.xlane.f32.xlu0 %v501
    %v503 = vpop.xlane.xlu0 %502
    %v504 = vsel %vm84, %v496, 0.0
    %505 = vadd.xlane.f32.xlu0 %v504
    %v506 = vpop.xlane.xlu0 %505
    %v507 = vsel %vm84, %v498, 0.0
    %508 = vadd.xlane.f32.xlu0 %v507
    %v509 = vpop.xlane.xlu0 %508
    %v510 = vsel %vm84, %v500, 0.0
    %511 = vadd.xlane.f32.xlu0 %v510
    %v512 = vpop.xlane.xlu0 %511
    %v513 = vrcp.pop %v503
    %v514 = vmul.f32 %v494, %v513
    %v515 = vrcp.pop %v506
    %v516 = vmul.f32 %v496, %v515
    %v517 = vrcp.pop %v509
    %v518 = vmul.f32 %v498, %v517
    %v519 = vrcp.pop %v512
    %v520 = vmul.f32 %v500, %v519
    %v522 = vsel %vm84, %v514, 0
    %v525 = vsel %vm84, %v516, 0
    %v528 = vsel %vm84, %v518, 0
    %v531 = vsel %vm84, %v520, 0
    %533 = vmatprep.subr.mxu0 0.0
    %534 = vmatpush1.msra.mxu0 %v342
    %535 = vmatprep.subr.mxu0 0.0
    %536 = vmatpush1.msra.mxu0 %v348
    %537 = vmatprep.subr.mxu0 0.0
    %538 = vmatpush1.msra.mxu0 %v354
    %539 = vmatprep.subr.mxu0 0.0
    %540 = vmatpush1.msra.mxu0 %v360
    %541 = vmatprep.subr.mxu0 0.0
    %542 = vmatpush1.msra.mxu0 0.0
    %543 = vmatprep.subr.mxu0 0.0
    %544 = vmatpush1.msra.mxu0 0.0
    %545 = vmatprep.subr.mxu0 0.0
    %546 = vmatpush1.msra.mxu0 0.0
    %547 = vmatprep.subr.mxu0 0.0
    %548 = vmatpush1.msra.mxu0 0.0
    %549 = vmatprep.subr.mxu0 0.0
    %550 = vmatpush1.msra.mxu0 0.0
    %551 = vmatprep.subr.mxu0 0.0
    %552 = vmatpush1.msra.mxu0 0.0
    %553 = vmatprep.subr.mxu0 0.0
    %554 = vmatpush1.msra.mxu0 0.0
    %555 = vmatprep.subr.mxu0 0.0
    %556 = vmatpush1.msra.mxu0 0.0
    %557 = vmatprep.subr.mxu0 0.0
    %558 = vmatpush1.msra.mxu0 0.0
    %559 = vmatprep.subr.mxu0 0.0
    %560 = vmatpush1.msra.mxu0 0.0
    %561 = vmatprep.subr.mxu0 0.0
    %562 = vmatpush1.msra.mxu0 0.0
    %563 = vmatprep.subr.mxu0 0.0
    %564 = vmatpush1.msra.mxu0 0.0
    %565 = vmatprep.subr.mxu0 0.0
    %566 = vmatpush1.msra.mxu0 0.0
    %567 = vmatprep.subr.mxu0 0.0
    %568 = vmatpush1.msra.mxu0 0.0
    %569 = vmatprep.subr.mxu0 0.0
    %570 = vmatpush1.msra.mxu0 0.0
    %571 = vmatprep.subr.mxu0 0.0
    %572 = vmatpush1.msra.mxu0 0.0
    %573 = vmatprep.subr.mxu0 0.0
    %574 = vmatpush1.msra.mxu0 0.0
    %575 = vmatprep.subr.mxu0 0.0
    %576 = vmatpush1.msra.mxu0 0.0
    %577 = vmatprep.subr.mxu0 0.0
    %578 = vmatpush1.msra.mxu0 0.0
    %579 = vmatprep.subr.mxu0 0.0
    %580 = vmatpush1.msra.mxu0 0.0
    %581 = vmatprep.subr.mxu0 0.0
    %582 = vmatpush1.msra.mxu0 0.0
    %583 = vmatprep.subr.mxu0 0.0
    %584 = vmatpush1.msra.mxu0 0.0
    %585 = vmatprep.subr.mxu0 0.0
    %586 = vmatpush1.msra.mxu0 0.0
    %587 = vmatprep.subr.mxu0 0.0
    %588 = vmatpush1.msra.mxu0 0.0
    %589 = vmatprep.subr.mxu0 0.0
    %590 = vmatpush1.msra.mxu0 0.0
    %591 = vmatprep.subr.mxu0 0.0
    %592 = vmatpush1.msra.mxu0 0.0
    %593 = vmatprep.subr.mxu0 0.0
    %594 = vmatpush1.msra.mxu0 0.0
    %595 = vmatprep.subr.mxu0 0.0
    %596 = vmatpush1.msra.mxu0 0.0
    %597 = vmatprep.mubr.f32.mxu0 0.0
    %598 = vmatmul.mubr.f32.gmra.mrb[0].mxu0 %v522
    %v599 = vpop.f32.mrb[0].mxu0
    %v600 = vadd.f32 0.0, %v599
    %v601 = vpop.f32.mrb[0].mxu0
    %602 = vmatprep.mubr.f32.mxu0 0.0
    %603 = vmatmul.mubr.f32.gmra.mrb[0].mxu0 %v525
    %v604 = vpop.f32.mrb[0].mxu0
    %v605 = vadd.f32 0.0, %v604
    %v606 = vpop.f32.mrb[0].mxu0
    %607 = vmatprep.mubr.f32.mxu0 0.0
    %608 = vmatmul.mubr.f32.gmra.mrb[0].mxu0 %v528
    %v609 = vpop.f32.mrb[0].mxu0
    %v610 = vadd.f32 0.0, %v609
    %v611 = vpop.f32.mrb[0].mxu0
    %612 = vmatprep.mubr.f32.mxu0 0.0
    %613 = vmatmul.mubr.f32.gmra.mrb[0].mxu0 %v531
    %v614 = vpop.f32.mrb[0].mxu0
    %v615 = vadd.f32 0.0, %v614
    %v616 = vpop.f32.mrb[0].mxu0
    %617 = vdwg.mxu0
    %618 = vrot.lane.b32.xlu0 %v164, 96
    %v619 = vpop.permute.xlu0 %618
    %620 = vrot.lane.b32.xlu0 %v170, 96
    %v621 = vpop.permute.xlu0 %620
    %622 = vrot.lane.b32.xlu0 %v176, 96
    %v623 = vpop.permute.xlu0 %622
    %624 = vrot.lane.b32.xlu0 %v182, 96
    %v625 = vpop.permute.xlu0 %624
    %626 = vrot.lane.b32.xlu0 %v253, 96
    %v627 = vpop.permute.xlu0 %626
    %628 = vrot.lane.b32.xlu0 %v259, 96
    %v629 = vpop.permute.xlu0 %628
    %630 = vrot.lane.b32.xlu0 %v265, 96
    %v631 = vpop.permute.xlu0 %630
    %632 = vrot.lane.b32.xlu0 %v271, 96
    %v633 = vpop.permute.xlu0 %632
    %v634 = vsel %vm84, %v619, 0
    %v636 = vsel %vm84, %v621, 0
    %v638 = vsel %vm84, %v623, 0
    %v640 = vsel %vm84, %v625, 0
    %v642 = vsel %vm84, %v627, 0
    %v644 = vsel %vm84, %v629, 0
    %v646 = vsel %vm84, %v631, 0
    %v648 = vsel %vm84, %v633, 0
    %650 = vmatprep.subr.mxu0 0.0
    %651 = vmatpush1.xpose.msra.mxu0 %v642
    %652 = vmatprep.subr.mxu0 0.0
    %653 = vmatpush1.xpose.msra.mxu0 %v644
    %654 = vmatprep.subr.mxu0 0.0
    %655 = vmatpush1.xpose.msra.mxu0 %v646
    %656 = vmatprep.subr.mxu0 0.0
    %657 = vmatpush1.xpose.msra.mxu0 %v648
    %658 = vmatprep.subr.mxu0 0.0
    %659 = vmatpush1.xpose.msra.mxu0 0.0
    %660 = vmatprep.subr.mxu0 0.0
    %661 = vmatpush1.xpose.msra.mxu0 0.0
    %662 = vmatprep.subr.mxu0 0.0
    %663 = vmatpush1.xpose.msra.mxu0 0.0
    %664 = vmatprep.subr.mxu0 0.0
    %665 = vmatpush1.xpose.msra.mxu0 0.0
    %666 = vmatprep.subr.mxu0 0.0
    %667 = vmatpush1.xpose.msra.mxu0 0.0
    %668 = vmatprep.subr.mxu0 0.0
    %669 = vmatpush1.xpose.msra.mxu0 0.0
    %670 = vmatprep.subr.mxu0 0.0
    %671 = vmatpush1.xpose.msra.mxu0 0.0
    %672 = vmatprep.subr.mxu0 0.0
    %673 = vmatpush1.xpose.msra.mxu0 0.0
    %674 = vmatprep.subr.mxu0 0.0
    %675 = vmatpush1.xpose.msra.mxu0 0.0
    %676 = vmatprep.subr.mxu0 0.0
    %677 = vmatpush1.xpose.msra.mxu0 0.0
    %678 = vmatprep.subr.mxu0 0.0
    %679 = vmatpush1.xpose.msra.mxu0 0.0
    %680 = vmatprep.subr.mxu0 0.0
    %681 = vmatpush1.xpose.msra.mxu0 0.0
    %682 = vmatprep.subr.mxu0 0.0
    %683 = vmatpush1.xpose.msra.mxu0 0.0
    %684 = vmatprep.subr.mxu0 0.0
    %685 = vmatpush1.xpose.msra.mxu0 0.0
    %686 = vmatprep.subr.mxu0 0.0
    %687 = vmatpush1.xpose.msra.mxu0 0.0
    %688 = vmatprep.subr.mxu0 0.0
    %689 = vmatpush1.xpose.msra.mxu0 0.0
    %690 = vmatprep.subr.mxu0 0.0
    %691 = vmatpush1.xpose.msra.mxu0 0.0
    %692 = vmatprep.subr.mxu0 0.0
    %693 = vmatpush1.xpose.msra.mxu0 0.0
    %694 = vmatprep.subr.mxu0 0.0
    %695 = vmatpush1.xpose.msra.mxu0 0.0
    %696 = vmatprep.subr.mxu0 0.0
    %697 = vmatpush1.xpose.msra.mxu0 0.0
    %698 = vmatprep.subr.mxu0 0.0
    %699 = vmatpush1.xpose.msra.mxu0 0.0
    %700 = vmatprep.subr.mxu0 0.0
    %701 = vmatpush1.xpose.msra.mxu0 0.0
    %702 = vmatprep.subr.mxu0 0.0
    %703 = vmatpush1.xpose.msra.mxu0 0.0
    %704 = vmatprep.subr.mxu0 0.0
    %705 = vmatpush1.xpose.msra.mxu0 0.0
    %706 = vmatprep.subr.mxu0 0.0
    %707 = vmatpush1.xpose.msra.mxu0 0.0
    %708 = vmatprep.subr.mxu0 0.0
    %709 = vmatpush1.xpose.msra.mxu0 0.0
    %710 = vmatprep.subr.mxu0 0.0
    %711 = vmatpush1.xpose.msra.mxu0 0.0
    %712 = vmatprep.subr.mxu0 0.0
    %713 = vmatpush1.xpose.msra.mxu0 0.0
    %714 = vmatprep.mubr.f32.mxu0 0.0
    %715 = vmatmul.mubr.f32.gmra.mrb[0].mxu0 %v634
    %v716 = vpop.f32.mrb[0].mxu0
    %v717 = vadd.f32 %v364, %v716
    %v718 = vpop.f32.mrb[0].mxu0
    %719 = vmatprep.mubr.f32.mxu0 0.0
    %720 = vmatmul.mubr.f32.gmra.mrb[0].mxu0 %v636
    %v721 = vpop.f32.mrb[0].mxu0
    %v722 = vadd.f32 %v365, %v721
    %v723 = vpop.f32.mrb[0].mxu0
    %724 = vmatprep.mubr.f32.mxu0 0.0
    %725 = vmatmul.mubr.f32.gmra.mrb[0].mxu0 %v638
    %v726 = vpop.f32.mrb[0].mxu0
    %v727 = vadd.f32 %v366, %v726
    %v728 = vpop.f32.mrb[0].mxu0
    %729 = vmatprep.mubr.f32.mxu0 0.0
    %730 = vmatmul.mubr.f32.gmra.mrb[0].mxu0 %v640
    %v731 = vpop.f32.mrb[0].mxu0
    %v732 = vadd.f32 %v367, %v731
    %v733 = vpop.f32.mrb[0].mxu0
    %734 = vdwg.mxu0
    %v735 = vsel %vm84, %v717, -inf
    %736 = vmax.xlane.f32.xlu0 %v735
    %v737 = vpop.xlane.xlu0 %736
    %v738 = vsel %vm84, %v722, -inf
    %739 = vmax.xlane.f32.xlu0 %v738
    %v740 = vpop.xlane.xlu0 %739
    %v741 = vsel %vm84, %v727, -inf
    %742 = vmax.xlane.f32.xlu0 %v741
    %v743 = vpop.xlane.xlu0 %742
    %v744 = vsel %vm84, %v732, -inf
    %745 = vmax.xlane.f32.xlu0 %v744
    %v746 = vpop.xlane.xlu0 %745
    %v747 = vsub.f32 %v717, %v737
    %v748 = vsub.f32 %v722, %v740
    %v749 = vsub.f32 %v727, %v743
    %v750 = vsub.f32 %v732, %v746
    %v751 = vmul.f32 %v747, 1.442695
    %v752 = vpow.pop %v751
    %v753 = vmul.f32 %v748, 1.442695
    %v754 = vpow.pop %v753
    %v755 = vmul.f32 %v749, 1.442695
    %v756 = vpow.pop %v755
    %v757 = vmul.f32 %v750, 1.442695
    %v758 = vpow.pop %v757
    %v759 = vsel %vm84, %v752, 0.0
    %760 = vadd.xlane.f32.xlu0 %v759
    %v761 = vpop.xlane.xlu0 %760
    %v762 = vsel %vm84, %v754, 0.0
    %763 = vadd.xlane.f32.xlu0 %v762
    %v764 = vpop.xlane.xlu0 %763
    %v765 = vsel %vm84, %v756, 0.0
    %766 = vadd.xlane.f32.xlu0 %v765
    %v767 = vpop.xlane.xlu0 %766
    %v768 = vsel %vm84, %v758, 0.0
    %769 = vadd.xlane.f32.xlu0 %v768
    %v770 = vpop.xlane.xlu0 %769
    %v771 = vrcp.pop %v761
    %v772 = vmul.f32 %v752, %v771
    %v773 = vrcp.pop %v764
    %v774 = vmul.f32 %v754, %v773
    %v775 = vrcp.pop %v767
    %v776 = vmul.f32 %v756, %v775
    %v777 = vrcp.pop %v770
    %v778 = vmul.f32 %v758, %v777
    %783 = vrot.lane.b32.xlu0 %v342, 96
    %v784 = vpop.permute.xlu0 %783
    %785 = vrot.lane.b32.xlu0 %v348, 96
    %v786 = vpop.permute.xlu0 %785
    %787 = vrot.lane.b32.xlu0 %v354, 96
    %v788 = vpop.permute.xlu0 %787
    %789 = vrot.lane.b32.xlu0 %v360, 96
    %v790 = vpop.permute.xlu0 %789
    %v796 = vsel %vm84, %v772, 0
    %v799 = vsel %vm84, %v774, 0
    %v802 = vsel %vm84, %v776, 0
    %v805 = vsel %vm84, %v778, 0
    %807 = vmatprep.subr.mxu0 0.0
    %808 = vmatpush1.msra.mxu0 %v784
    %809 = vmatprep.subr.mxu0 0.0
    %810 = vmatpush1.msra.mxu0 %v786
    %811 = vmatprep.subr.mxu0 0.0
    %812 = vmatpush1.msra.mxu0 %v788
    %813 = vmatprep.subr.mxu0 0.0
    %814 = vmatpush1.msra.mxu0 %v790
    %815 = vmatprep.subr.mxu0 0.0
    %816 = vmatpush1.msra.mxu0 0.0
    %817 = vmatprep.subr.mxu0 0.0
    %818 = vmatpush1.msra.mxu0 0.0
    %819 = vmatprep.subr.mxu0 0.0
    %820 = vmatpush1.msra.mxu0 0.0
    %821 = vmatprep.subr.mxu0 0.0
    %822 = vmatpush1.msra.mxu0 0.0
    %823 = vmatprep.subr.mxu0 0.0
    %824 = vmatpush1.msra.mxu0 0.0
    %825 = vmatprep.subr.mxu0 0.0
    %826 = vmatpush1.msra.mxu0 0.0
    %827 = vmatprep.subr.mxu0 0.0
    %828 = vmatpush1.msra.mxu0 0.0
    %829 = vmatprep.subr.mxu0 0.0
    %830 = vmatpush1.msra.mxu0 0.0
    %831 = vmatprep.subr.mxu0 0.0
    %832 = vmatpush1.msra.mxu0 0.0
    %833 = vmatprep.subr.mxu0 0.0
    %834 = vmatpush1.msra.mxu0 0.0
    %835 = vmatprep.subr.mxu0 0.0
    %836 = vmatpush1.msra.mxu0 0.0
    %837 = vmatprep.subr.mxu0 0.0
    %838 = vmatpush1.msra.mxu0 0.0
    %839 = vmatprep.subr.mxu0 0.0
    %840 = vmatpush1.msra.mxu0 0.0
    %841 = vmatprep.subr.mxu0 0.0
    %842 = vmatpush1.msra.mxu0 0.0
    %843 = vmatprep.subr.mxu0 0.0
    %844 = vmatpush1.msra.mxu0 0.0
    %845 = vmatprep.subr.mxu0 0.0
    %846 = vmatpush1.msra.mxu0 0.0
    %847 = vmatprep.subr.mxu0 0.0
    %848 = vmatpush1.msra.mxu0 0.0
    %849 = vmatprep.subr.mxu0 0.0
    %850 = vmatpush1.msra.mxu0 0.0
    %851 = vmatprep.subr.mxu0 0.0
    %852 = vmatpush1.msra.mxu0 0.0
    %853 = vmatprep.subr.mxu0 0.0
    %854 = vmatpush1.msra.mxu0 0.0
    %855 = vmatprep.subr.mxu0 0.0
    %856 = vmatpush1.msra.mxu0 0.0
    %857 = vmatprep.subr.mxu0 0.0
    %858 = vmatpush1.msra.mxu0 0.0
    %859 = vmatprep.subr.mxu0 0.0
    %860 = vmatpush1.msra.mxu0 0.0
    %861 = vmatprep.subr.mxu0 0.0
    %862 = vmatpush1.msra.mxu0 0.0
    %863 = vmatprep.subr.mxu0 0.0
    %864 = vmatpush1.msra.mxu0 0.0
    %865 = vmatprep.subr.mxu0 0.0
    %866 = vmatpush1.msra.mxu0 0.0
    %867 = vmatprep.subr.mxu0 0.0
    %868 = vmatpush1.msra.mxu0 0.0
    %869 = vmatprep.subr.mxu0 0.0
    %870 = vmatpush1.msra.mxu0 0.0
    %871 = vmatprep.mubr.f32.mxu0 0.0
    %872 = vmatmul.mubr.f32.gmra.mrb[0].mxu0 %v796
    %v873 = vpop.f32.mrb[0].mxu0
    %v874 = vadd.f32 0.0, %v873
    %v875 = vpop.f32.mrb[0].mxu0
    %876 = vmatprep.mubr.f32.mxu0 0.0
    %877 = vmatmul.mubr.f32.gmra.mrb[0].mxu0 %v799
    %v878 = vpop.f32.mrb[0].mxu0
    %v879 = vadd.f32 0.0, %v878
    %v880 = vpop.f32.mrb[0].mxu0
    %881 = vmatprep.mubr.f32.mxu0 0.0
    %882 = vmatmul.mubr.f32.gmra.mrb[0].mxu0 %v802
    %v883 = vpop.f32.mrb[0].mxu0
    %v884 = vadd.f32 0.0, %v883
    %v885 = vpop.f32.mrb[0].mxu0
    %886 = vmatprep.mubr.f32.mxu0 0.0
    %887 = vmatmul.mubr.f32.gmra.mrb[0].mxu0 %v805
    %v888 = vpop.f32.mrb[0].mxu0
    %v889 = vadd.f32 0.0, %v888
    %v890 = vpop.f32.mrb[0].mxu0
    %891 = vdwg.mxu0
    %892 = vrot.lane.b32.xlu0 %v164, 64
    %v893 = vpop.permute.xlu0 %892
    %894 = vrot.lane.b32.xlu0 %v170, 64
    %v895 = vpop.permute.xlu0 %894
    %896 = vrot.lane.b32.xlu0 %v176, 64
    %v897 = vpop.permute.xlu0 %896
    %898 = vrot.lane.b32.xlu0 %v182, 64
    %v899 = vpop.permute.xlu0 %898
    %900 = vrot.lane.b32.xlu0 %v253, 64
    %v901 = vpop.permute.xlu0 %900
    %902 = vrot.lane.b32.xlu0 %v259, 64
    %v903 = vpop.permute.xlu0 %902
    %904 = vrot.lane.b32.xlu0 %v265, 64
    %v905 = vpop.permute.xlu0 %904
    %906 = vrot.lane.b32.xlu0 %v271, 64
    %v907 = vpop.permute.xlu0 %906
    %v908 = vsel %vm84, %v893, 0
    %v910 = vsel %vm84, %v895, 0
    %v912 = vsel %vm84, %v897, 0
    %v914 = vsel %vm84, %v899, 0
    %v916 = vsel %vm84, %v901, 0
    %v918 = vsel %vm84, %v903, 0
    %v920 = vsel %vm84, %v905, 0
    %v922 = vsel %vm84, %v907, 0
    %924 = vmatprep.subr.mxu0 0.0
    %925 = vmatpush1.xpose.msra.mxu0 %v916
    %926 = vmatprep.subr.mxu0 0.0
    %927 = vmatpush1.xpose.msra.mxu0 %v918
    %928 = vmatprep.subr.mxu0 0.0
    %929 = vmatpush1.xpose.msra.mxu0 %v920
    %930 = vmatprep.subr.mxu0 0.0
    %931 = vmatpush1.xpose.msra.mxu0 %v922
    %932 = vmatprep.subr.mxu0 0.0
    %933 = vmatpush1.xpose.msra.mxu0 0.0
    %934 = vmatprep.subr.mxu0 0.0
    %935 = vmatpush1.xpose.msra.mxu0 0.0
    %936 = vmatprep.subr.mxu0 0.0
    %937 = vmatpush1.xpose.msra.mxu0 0.0
    %938 = vmatprep.subr.mxu0 0.0
    %939 = vmatpush1.xpose.msra.mxu0 0.0
    %940 = vmatprep.subr.mxu0 0.0
    %941 = vmatpush1.xpose.msra.mxu0 0.0
    %942 = vmatprep.subr.mxu0 0.0
    %943 = vmatpush1.xpose.msra.mxu0 0.0
    %944 = vmatprep.subr.mxu0 0.0
    %945 = vmatpush1.xpose.msra.mxu0 0.0
    %946 = vmatprep.subr.mxu0 0.0
    %947 = vmatpush1.xpose.msra.mxu0 0.0
    %948 = vmatprep.subr.mxu0 0.0
    %949 = vmatpush1.xpose.msra.mxu0 0.0
    %950 = vmatprep.subr.mxu0 0.0
    %951 = vmatpush1.xpose.msra.mxu0 0.0
    %952 = vmatprep.subr.mxu0 0.0
    %953 = vmatpush1.xpose.msra.mxu0 0.0
    %954 = vmatprep.subr.mxu0 0.0
    %955 = vmatpush1.xpose.msra.mxu0 0.0
    %956 = vmatprep.subr.mxu0 0.0
    %957 = vmatpush1.xpose.msra.mxu0 0.0
    %958 = vmatprep.subr.mxu0 0.0
    %959 = vmatpush1.xpose.msra.mxu0 0.0
    %960 = vmatprep.subr.mxu0 0.0
    %961 = vmatpush1.xpose.msra.mxu0 0.0
    %962 = vmatprep.subr.mxu0 0.0
    %963 = vmatpush1.xpose.msra.mxu0 0.0
    %964 = vmatprep.subr.mxu0 0.0
    %965 = vmatpush1.xpose.msra.mxu0 0.0
    %966 = vmatprep.subr.mxu0 0.0
    %967 = vmatpush1.xpose.msra.mxu0 0.0
    %968 = vmatprep.subr.mxu0 0.0
    %969 = vmatpush1.xpose.msra.mxu0 0.0
    %970 = vmatprep.subr.mxu0 0.0
    %971 = vmatpush1.xpose.msra.mxu0 0.0
    %972 = vmatprep.subr.mxu0 0.0
    %973 = vmatpush1.xpose.msra.mxu0 0.0
    %974 = vmatprep.subr.mxu0 0.0
    %975 = vmatpush1.xpose.msra.mxu0 0.0
    %976 = vmatprep.subr.mxu0 0.0
    %977 = vmatpush1.xpose.msra.mxu0 0.0
    %978 = vmatprep.subr.mxu0 0.0
    %979 = vmatpush1.xpose.msra.mxu0 0.0
    %980 = vmatprep.subr.mxu0 0.0
    %981 = vmatpush1.xpose.msra.mxu0 0.0
    %982 = vmatprep.subr.mxu0 0.0
    %983 = vmatpush1.xpose.msra.mxu0 0.0
    %984 = vmatprep.subr.mxu0 0.0
    %985 = vmatpush1.xpose.msra.mxu0 0.0
    %986 = vmatprep.subr.mxu0 0.0
    %987 = vmatpush1.xpose.msra.mxu0 0.0
    %988 = vmatprep.mubr.f32.mxu0 0.0
    %989 = vmatmul.mubr.f32.gmra.mrb[0].mxu0 %v908
    %v990 = vpop.f32.mrb[0].mxu0
    %v991 = vadd.f32 %v364, %v990
    %v992 = vpop.f32.mrb[0].mxu0
    %993 = vmatprep.mubr.f32.mxu0 0.0
    %994 = vmatmul.mubr.f32.gmra.mrb[0].mxu0 %v910
    %v995 = vpop.f32.mrb[0].mxu0
    %v996 = vadd.f32 %v365, %v995
    %v997 = vpop.f32.mrb[0].mxu0
    %998 = vmatprep.mubr.f32.mxu0 0.0
    %999 = vmatmul.mubr.f32.gmra.mrb[0].mxu0 %v912
    %v1000 = vpop.f32.mrb[0].mxu0
    %v1001 = vadd.f32 %v366, %v1000
    %v1002 = vpop.f32.mrb[0].mxu0
    %1003 = vmatprep.mubr.f32.mxu0 0.0
    %1004 = vmatmul.mubr.f32.gmra.mrb[0].mxu0 %v914
    %v1005 = vpop.f32.mrb[0].mxu0
    %v1006 = vadd.f32 %v367, %v1005
    %v1007 = vpop.f32.mrb[0].mxu0
    %1008 = vdwg.mxu0
    %v1009 = vsel %vm84, %v991, -inf
    %1010 = vmax.xlane.f32.xlu0 %v1009
    %v1011 = vpop.xlane.xlu0 %1010
    %v1012 = vsel %vm84, %v996, -inf
    %1013 = vmax.xlane.f32.xlu0 %v1012
    %v1014 = vpop.xlane.xlu0 %1013
    %v1015 = vsel %vm84, %v1001, -inf
    %1016 = vmax.xlane.f32.xlu0 %v1015
    %v1017 = vpop.xlane.xlu0 %1016
    %v1018 = vsel %vm84, %v1006, -inf
    %1019 = vmax.xlane.f32.xlu0 %v1018
    %v1020 = vpop.xlane.xlu0 %1019
    %v1021 = vsub.f32 %v991, %v1011
    %v1022 = vsub.f32 %v996, %v1014
    %v1023 = vsub.f32 %v1001, %v1017
    %v1024 = vsub.f32 %v1006, %v1020
    %v1025 = vmul.f32 %v1021, 1.442695
    %v1026 = vpow.pop %v1025
    %v1027 = vmul.f32 %v1022, 1.442695
    %v1028 = vpow.pop %v1027
    %v1029 = vmul.f32 %v1023, 1.442695
    %v1030 = vpow.pop %v1029
    %v1031 = vmul.f32 %v1024, 1.442695
    %v1032 = vpow.pop %v1031
    %v1033 = vsel %vm84, %v1026, 0.0
    %1034 = vadd.xlane.f32.xlu0 %v1033
    %v1035 = vpop.xlane.xlu0 %1034
    %v1036 = vsel %vm84, %v1028, 0.0
    %1037 = vadd.xlane.f32.xlu0 %v1036
    %v1038 = vpop.xlane.xlu0 %1037
    %v1039 = vsel %vm84, %v1030, 0.0
    %1040 = vadd.xlane.f32.xlu0 %v1039
    %v1041 = vpop.xlane.xlu0 %1040
    %v1042 = vsel %vm84, %v1032, 0.0
    %1043 = vadd.xlane.f32.xlu0 %v1042
    %v1044 = vpop.xlane.xlu0 %1043
    %v1045 = vrcp.pop %v1035
    %v1046 = vmul.f32 %v1026, %v1045
    %v1047 = vrcp.pop %v1038
    %v1048 = vmul.f32 %v1028, %v1047
    %v1049 = vrcp.pop %v1041
    %v1050 = vmul.f32 %v1030, %v1049
    %v1051 = vrcp.pop %v1044
    %v1052 = vmul.f32 %v1032, %v1051
    %1053 = vrot.lane.b32.xlu0 %v342, 64
    %v1054 = vpop.permute.xlu0 %1053
    %1055 = vrot.lane.b32.xlu0 %v348, 64
    %v1056 = vpop.permute.xlu0 %1055
    %1057 = vrot.lane.b32.xlu0 %v354, 64
    %v1058 = vpop.permute.xlu0 %1057
    %1059 = vrot.lane.b32.xlu0 %v360, 64
    %v1060 = vpop.permute.xlu0 %1059
    %v1066 = vsel %vm84, %v1046, 0
    %v1069 = vsel %vm84, %v1048, 0
    %v1072 = vsel %vm84, %v1050, 0
    %v1075 = vsel %vm84, %v1052, 0
    %1077 = vmatprep.subr.mxu0 0.0
    %1078 = vmatpush1.msra.mxu0 %v1054
    %1079 = vmatprep.subr.mxu0 0.0
    %1080 = vmatpush1.msra.mxu0 %v1056
    %1081 = vmatprep.subr.mxu0 0.0
    %1082 = vmatpush1.msra.mxu0 %v1058
    %1083 = vmatprep.subr.mxu0 0.0
    %1084 = vmatpush1.msra.mxu0 %v1060
    %1085 = vmatprep.subr.mxu0 0.0
    %1086 = vmatpush1.msra.mxu0 0.0
    %1087 = vmatprep.subr.mxu0 0.0
    %1088 = vmatpush1.msra.mxu0 0.0
    %1089 = vmatprep.subr.mxu0 0.0
    %1090 = vmatpush1.msra.mxu0 0.0
    %1091 = vmatprep.subr.mxu0 0.0
    %1092 = vmatpush1.msra.mxu0 0.0
    %1093 = vmatprep.subr.mxu0 0.0
    %1094 = vmatpush1.msra.mxu0 0.0
    %1095 = vmatprep.subr.mxu0 0.0
    %1096 = vmatpush1.msra.mxu0 0.0
    %1097 = vmatprep.subr.mxu0 0.0
    %1098 = vmatpush1.msra.mxu0 0.0
    %1099 = vmatprep.subr.mxu0 0.0
    %1100 = vmatpush1.msra.mxu0 0.0
    %1101 = vmatprep.subr.mxu0 0.0
    %1102 = vmatpush1.msra.mxu0 0.0
    %1103 = vmatprep.subr.mxu0 0.0
    %1104 = vmatpush1.msra.mxu0 0.0
    %1105 = vmatprep.subr.mxu0 0.0
    %1106 = vmatpush1.msra.mxu0 0.0
    %1107 = vmatprep.subr.mxu0 0.0
    %1108 = vmatpush1.msra.mxu0 0.0
    %1109 = vmatprep.subr.mxu0 0.0
    %1110 = vmatpush1.msra.mxu0 0.0
    %1111 = vmatprep.subr.mxu0 0.0
    %1112 = vmatpush1.msra.mxu0 0.0
    %1113 = vmatprep.subr.mxu0 0.0
    %1114 = vmatpush1.msra.mxu0 0.0
    %1115 = vmatprep.subr.mxu0 0.0
    %1116 = vmatpush1.msra.mxu0 0.0
    %1117 = vmatprep.subr.mxu0 0.0
    %1118 = vmatpush1.msra.mxu0 0.0
    %1119 = vmatprep.subr.mxu0 0.0
    %1120 = vmatpush1.msra.mxu0 0.0
    %1121 = vmatprep.subr.mxu0 0.0
    %1122 = vmatpush1.msra.mxu0 0.0
    %1123 = vmatprep.subr.mxu0 0.0
    %1124 = vmatpush1.msra.mxu0 0.0
    %1125 = vmatprep.subr.mxu0 0.0
    %1126 = vmatpush1.msra.mxu0 0.0
    %1127 = vmatprep.subr.mxu0 0.0
    %1128 = vmatpush1.msra.mxu0 0.0
    %1129 = vmatprep.subr.mxu0 0.0
    %1130 = vmatpush1.msra.mxu0 0.0
    %1131 = vmatprep.subr.mxu0 0.0
    %1132 = vmatpush1.msra.mxu0 0.0
    %1133 = vmatprep.subr.mxu0 0.0
    %1134 = vmatpush1.msra.mxu0 0.0
    %1135 = vmatprep.subr.mxu0 0.0
    %1136 = vmatpush1.msra.mxu0 0.0
    %1137 = vmatprep.subr.mxu0 0.0
    %1138 = vmatpush1.msra.mxu0 0.0
    %1139 = vmatprep.subr.mxu0 0.0
    %1140 = vmatpush1.msra.mxu0 0.0
    %1141 = vmatprep.mubr.f32.mxu0 0.0
    %1142 = vmatmul.mubr.f32.gmra.mrb[0].mxu0 %v1066
    %v1143 = vpop.f32.mrb[0].mxu0
    %v1144 = vadd.f32 0.0, %v1143
    %v1145 = vpop.f32.mrb[0].mxu0
    %1146 = vmatprep.mubr.f32.mxu0 0.0
    %1147 = vmatmul.mubr.f32.gmra.mrb[0].mxu0 %v1069
    %v1148 = vpop.f32.mrb[0].mxu0
    %v1149 = vadd.f32 0.0, %v1148
    %v1150 = vpop.f32.mrb[0].mxu0
    %1151 = vmatprep.mubr.f32.mxu0 0.0
    %1152 = vmatmul.mubr.f32.gmra.mrb[0].mxu0 %v1072
    %v1153 = vpop.f32.mrb[0].mxu0
    %v1154 = vadd.f32 0.0, %v1153
    %v1155 = vpop.f32.mrb[0].mxu0
    %1156 = vmatprep.mubr.f32.mxu0 0.0
    %1157 = vmatmul.mubr.f32.gmra.mrb[0].mxu0 %v1075
    %v1158 = vpop.f32.mrb[0].mxu0
    %v1159 = vadd.f32 0.0, %v1158
    %v1160 = vpop.f32.mrb[0].mxu0
    %1161 = vdwg.mxu0
    %1162 = vrot.lane.b32.xlu0 %v164, 32
    %v1163 = vpop.permute.xlu0 %1162
    %1164 = vrot.lane.b32.xlu0 %v170, 32
    %v1165 = vpop.permute.xlu0 %1164
    %1166 = vrot.lane.b32.xlu0 %v176, 32
    %v1167 = vpop.permute.xlu0 %1166
    %1168 = vrot.lane.b32.xlu0 %v182, 32
    %v1169 = vpop.permute.xlu0 %1168
    %1170 = vrot.lane.b32.xlu0 %v253, 32
    %v1171 = vpop.permute.xlu0 %1170
    %1172 = vrot.lane.b32.xlu0 %v259, 32
    %v1173 = vpop.permute.xlu0 %1172
    %1174 = vrot.lane.b32.xlu0 %v265, 32
    %v1175 = vpop.permute.xlu0 %1174
    %1176 = vrot.lane.b32.xlu0 %v271, 32
    %v1177 = vpop.permute.xlu0 %1176
    %v1178 = vsel %vm84, %v1163, 0
    %v1180 = vsel %vm84, %v1165, 0
    %v1182 = vsel %vm84, %v1167, 0
    %v1184 = vsel %vm84, %v1169, 0
    %v1186 = vsel %vm84, %v1171, 0
    %v1188 = vsel %vm84, %v1173, 0
    %v1190 = vsel %vm84, %v1175, 0
    %v1192 = vsel %vm84, %v1177, 0
    %1194 = vmatprep.subr.mxu0 0.0
    %1195 = vmatpush1.xpose.msra.mxu0 %v1186
    %1196 = vmatprep.subr.mxu0 0.0
    %1197 = vmatpush1.xpose.msra.mxu0 %v1188
    %1198 = vmatprep.subr.mxu0 0.0
    %1199 = vmatpush1.xpose.msra.mxu0 %v1190
    %1200 = vmatprep.subr.mxu0 0.0
    %1201 = vmatpush1.xpose.msra.mxu0 %v1192
    %1202 = vmatprep.subr.mxu0 0.0
    %1203 = vmatpush1.xpose.msra.mxu0 0.0
    %1204 = vmatprep.subr.mxu0 0.0
    %1205 = vmatpush1.xpose.msra.mxu0 0.0
    %1206 = vmatprep.subr.mxu0 0.0
    %1207 = vmatpush1.xpose.msra.mxu0 0.0
    %1208 = vmatprep.subr.mxu0 0.0
    %1209 = vmatpush1.xpose.msra.mxu0 0.0
    %1210 = vmatprep.subr.mxu0 0.0
    %1211 = vmatpush1.xpose.msra.mxu0 0.0
    %1212 = vmatprep.subr.mxu0 0.0
    %1213 = vmatpush1.xpose.msra.mxu0 0.0
    %1214 = vmatprep.subr.mxu0 0.0
    %1215 = vmatpush1.xpose.msra.mxu0 0.0
    %1216 = vmatprep.subr.mxu0 0.0
    %1217 = vmatpush1.xpose.msra.mxu0 0.0
    %1218 = vmatprep.subr.mxu0 0.0
    %1219 = vmatpush1.xpose.msra.mxu0 0.0
    %1220 = vmatprep.subr.mxu0 0.0
    %1221 = vmatpush1.xpose.msra.mxu0 0.0
    %1222 = vmatprep.subr.mxu0 0.0
    %1223 = vmatpush1.xpose.msra.mxu0 0.0
    %1224 = vmatprep.subr.mxu0 0.0
    %1225 = vmatpush1.xpose.msra.mxu0 0.0
    %1226 = vmatprep.subr.mxu0 0.0
    %1227 = vmatpush1.xpose.msra.mxu0 0.0
    %1228 = vmatprep.subr.mxu0 0.0
    %1229 = vmatpush1.xpose.msra.mxu0 0.0
    %1230 = vmatprep.subr.mxu0 0.0
    %1231 = vmatpush1.xpose.msra.mxu0 0.0
    %1232 = vmatprep.subr.mxu0 0.0
    %1233 = vmatpush1.xpose.msra.mxu0 0.0
    %1234 = vmatprep.subr.mxu0 0.0
    %1235 = vmatpush1.xpose.msra.mxu0 0.0
    %1236 = vmatprep.subr.mxu0 0.0
    %1237 = vmatpush1.xpose.msra.mxu0 0.0
    %1238 = vmatprep.subr.mxu0 0.0
    %1239 = vmatpush1.xpose.msra.mxu0 0.0
    %1240 = vmatprep.subr.mxu0 0.0
    %1241 = vmatpush1.xpose.msra.mxu0 0.0
    %1242 = vmatprep.subr.mxu0 0.0
    %1243 = vmatpush1.xpose.msra.mxu0 0.0
    %1244 = vmatprep.subr.mxu0 0.0
    %1245 = vmatpush1.xpose.msra.mxu0 0.0
    %1246 = vmatprep.subr.mxu0 0.0
    %1247 = vmatpush1.xpose.msra.mxu0 0.0
    %1248 = vmatprep.subr.mxu0 0.0
    %1249 = vmatpush1.xpose.msra.mxu0 0.0
    %1250 = vmatprep.subr.mxu0 0.0
    %1251 = vmatpush1.xpose.msra.mxu0 0.0
    %1252 = vmatprep.subr.mxu0 0.0
    %1253 = vmatpush1.xpose.msra.mxu0 0.0
    %1254 = vmatprep.subr.mxu0 0.0
    %1255 = vmatpush1.xpose.msra.mxu0 0.0
    %1256 = vmatprep.subr.mxu0 0.0
    %1257 = vmatpush1.xpose.msra.mxu0 0.0
    %1258 = vmatprep.mubr.f32.mxu0 0.0
    %1259 = vmatmul.mubr.f32.gmra.mrb[0].mxu0 %v1178
    %v1260 = vpop.f32.mrb[0].mxu0
    %v1261 = vadd.f32 %v364, %v1260
    %v1262 = vpop.f32.mrb[0].mxu0
    %1263 = vmatprep.mubr.f32.mxu0 0.0
    %1264 = vmatmul.mubr.f32.gmra.mrb[0].mxu0 %v1180
    %v1265 = vpop.f32.mrb[0].mxu0
    %v1266 = vadd.f32 %v365, %v1265
    %v1267 = vpop.f32.mrb[0].mxu0
    %1268 = vmatprep.mubr.f32.mxu0 0.0
    %1269 = vmatmul.mubr.f32.gmra.mrb[0].mxu0 %v1182
    %v1270 = vpop.f32.mrb[0].mxu0
    %v1271 = vadd.f32 %v366, %v1270
    %v1272 = vpop.f32.mrb[0].mxu0
    %1273 = vmatprep.mubr.f32.mxu0 0.0
    %1274 = vmatmul.mubr.f32.gmra.mrb[0].mxu0 %v1184
    %v1275 = vpop.f32.mrb[0].mxu0
    %v1276 = vadd.f32 %v367, %v1275
    %v1277 = vpop.f32.mrb[0].mxu0
    %1278 = vdwg.mxu0
    %v1279 = vsel %vm84, %v1261, -inf
    %1280 = vmax.xlane.f32.xlu0 %v1279
    %v1281 = vpop.xlane.xlu0 %1280
    %v1282 = vsel %vm84, %v1266, -inf
    %1283 = vmax.xlane.f32.xlu0 %v1282
    %v1284 = vpop.xlane.xlu0 %1283
    %v1285 = vsel %vm84, %v1271, -inf
    %1286 = vmax.xlane.f32.xlu0 %v1285
    %v1287 = vpop.xlane.xlu0 %1286
    %v1288 = vsel %vm84, %v1276, -inf
    %1289 = vmax.xlane.f32.xlu0 %v1288
    %v1290 = vpop.xlane.xlu0 %1289
    %v1291 = vsub.f32 %v1261, %v1281
    %v1292 = vsub.f32 %v1266, %v1284
    %v1293 = vsub.f32 %v1271, %v1287
    %v1294 = vsub.f32 %v1276, %v1290
    %v1295 = vmul.f32 %v1291, 1.442695
    %v1296 = vpow.pop %v1295
    %v1297 = vmul.f32 %v1292, 1.442695
    %v1298 = vpow.pop %v1297
    %v1299 = vmul.f32 %v1293, 1.442695
    %v1300 = vpow.pop %v1299
    %v1301 = vmul.f32 %v1294, 1.442695
    %v1302 = vpow.pop %v1301
    %v1303 = vsel %vm84, %v1296, 0.0
    %1304 = vadd.xlane.f32.xlu0 %v1303
    %v1305 = vpop.xlane.xlu0 %1304
    %v1306 = vsel %vm84, %v1298, 0.0
    %1307 = vadd.xlane.f32.xlu0 %v1306
    %v1308 = vpop.xlane.xlu0 %1307
    %v1309 = vsel %vm84, %v1300, 0.0
    %1310 = vadd.xlane.f32.xlu0 %v1309
    %v1311 = vpop.xlane.xlu0 %1310
    %v1312 = vsel %vm84, %v1302, 0.0
    %1313 = vadd.xlane.f32.xlu0 %v1312
    %v1314 = vpop.xlane.xlu0 %1313
    %v1315 = vrcp.pop %v1305
    %v1316 = vmul.f32 %v1296, %v1315
    %v1317 = vrcp.pop %v1308
    %v1318 = vmul.f32 %v1298, %v1317
    %v1319 = vrcp.pop %v1311
    %v1320 = vmul.f32 %v1300, %v1319
    %v1321 = vrcp.pop %v1314
    %v1322 = vmul.f32 %v1302, %v1321
    %1323 = vrot.lane.b32.xlu0 %v342, 32
    %v1324 = vpop.permute.xlu0 %1323
    %1325 = vrot.lane.b32.xlu0 %v348, 32
    %v1326 = vpop.permute.xlu0 %1325
    %1327 = vrot.lane.b32.xlu0 %v354, 32
    %v1328 = vpop.permute.xlu0 %1327
    %1329 = vrot.lane.b32.xlu0 %v360, 32
    %v1330 = vpop.permute.xlu0 %1329
    %v1336 = vsel %vm84, %v1316, 0
    %v1339 = vsel %vm84, %v1318, 0
    %v1342 = vsel %vm84, %v1320, 0
    %v1345 = vsel %vm84, %v1322, 0
    %1347 = vmatprep.subr.mxu0 0.0
    %1348 = vmatpush1.msra.mxu0 %v1324
    %1349 = vmatprep.subr.mxu0 0.0
    %1350 = vmatpush1.msra.mxu0 %v1326
    %1351 = vmatprep.subr.mxu0 0.0
    %1352 = vmatpush1.msra.mxu0 %v1328
    %1353 = vmatprep.subr.mxu0 0.0
    %1354 = vmatpush1.msra.mxu0 %v1330
    %1355 = vmatprep.subr.mxu0 0.0
    %1356 = vmatpush1.msra.mxu0 0.0
    %1357 = vmatprep.subr.mxu0 0.0
    %1358 = vmatpush1.msra.mxu0 0.0
    %1359 = vmatprep.subr.mxu0 0.0
    %1360 = vmatpush1.msra.mxu0 0.0
    %1361 = vmatprep.subr.mxu0 0.0
    %1362 = vmatpush1.msra.mxu0 0.0
    %1363 = vmatprep.subr.mxu0 0.0
    %1364 = vmatpush1.msra.mxu0 0.0
    %1365 = vmatprep.subr.mxu0 0.0
    %1366 = vmatpush1.msra.mxu0 0.0
    %1367 = vmatprep.subr.mxu0 0.0
    %1368 = vmatpush1.msra.mxu0 0.0
    %1369 = vmatprep.subr.mxu0 0.0
    %1370 = vmatpush1.msra.mxu0 0.0
    %1371 = vmatprep.subr.mxu0 0.0
    %1372 = vmatpush1.msra.mxu0 0.0
    %1373 = vmatprep.subr.mxu0 0.0
    %1374 = vmatpush1.msra.mxu0 0.0
    %1375 = vmatprep.subr.mxu0 0.0
    %1376 = vmatpush1.msra.mxu0 0.0
    %1377 = vmatprep.subr.mxu0 0.0
    %1378 = vmatpush1.msra.mxu0 0.0
    %1379 = vmatprep.subr.mxu0 0.0
    %1380 = vmatpush1.msra.mxu0 0.0
    %1381 = vmatprep.subr.mxu0 0.0
    %1382 = vmatpush1.msra.mxu0 0.0
    %1383 = vmatprep.subr.mxu0 0.0
    %1384 = vmatpush1.msra.mxu0 0.0
    %1385 = vmatprep.subr.mxu0 0.0
    %1386 = vmatpush1.msra.mxu0 0.0
    %1387 = vmatprep.subr.mxu0 0.0
    %1388 = vmatpush1.msra.mxu0 0.0
    %1389 = vmatprep.subr.mxu0 0.0
    %1390 = vmatpush1.msra.mxu0 0.0
    %1391 = vmatprep.subr.mxu0 0.0
    %1392 = vmatpush1.msra.mxu0 0.0
    %1393 = vmatprep.subr.mxu0 0.0
    %1394 = vmatpush1.msra.mxu0 0.0
    %1395 = vmatprep.subr.mxu0 0.0
    %1396 = vmatpush1.msra.mxu0 0.0
    %1397 = vmatprep.subr.mxu0 0.0
    %1398 = vmatpush1.msra.mxu0 0.0
    %1399 = vmatprep.subr.mxu0 0.0
    %1400 = vmatpush1.msra.mxu0 0.0
    %1401 = vmatprep.subr.mxu0 0.0
    %1402 = vmatpush1.msra.mxu0 0.0
    %1403 = vmatprep.subr.mxu0 0.0
    %1404 = vmatpush1.msra.mxu0 0.0
    %1405 = vmatprep.subr.mxu0 0.0
    %1406 = vmatpush1.msra.mxu0 0.0
    %1407 = vmatprep.subr.mxu0 0.0
    %1408 = vmatpush1.msra.mxu0 0.0
    %1409 = vmatprep.subr.mxu0 0.0
    %1410 = vmatpush1.msra.mxu0 0.0
    %1411 = vmatprep.mubr.f32.mxu0 0.0
    %1412 = vmatmul.mubr.f32.gmra.mrb[0].mxu0 %v1336
    %v1413 = vpop.f32.mrb[0].mxu0
    %v1414 = vadd.f32 0.0, %v1413
    %v1415 = vpop.f32.mrb[0].mxu0
    %1416 = vmatprep.mubr.f32.mxu0 0.0
    %1417 = vmatmul.mubr.f32.gmra.mrb[0].mxu0 %v1339
    %v1418 = vpop.f32.mrb[0].mxu0
    %v1419 = vadd.f32 0.0, %v1418
    %v1420 = vpop.f32.mrb[0].mxu0
    %1421 = vmatprep.mubr.f32.mxu0 0.0
    %1422 = vmatmul.mubr.f32.gmra.mrb[0].mxu0 %v1342
    %v1423 = vpop.f32.mrb[0].mxu0
    %v1424 = vadd.f32 0.0, %v1423
    %v1425 = vpop.f32.mrb[0].mxu0
    %1426 = vmatprep.mubr.f32.mxu0 0.0
    %1427 = vmatmul.mubr.f32.gmra.mrb[0].mxu0 %v1345
    %v1428 = vpop.f32.mrb[0].mxu0
    %v1429 = vadd.f32 0.0, %v1428
    %v1430 = vpop.f32.mrb[0].mxu0
    %1431 = vdwg.mxu0
    %v1433 = vsel %vm84, %v166, 0
    %v1436 = vsel %vm84, %v172, 0
    %v1439 = vsel %vm84, %v178, 0
    %v1442 = vsel %vm84, %v184, 0
    %v1445 = vsel %vm84, %v255, 0
    %v1448 = vsel %vm84, %v261, 0
    %v1451 = vsel %vm84, %v267, 0
    %v1454 = vsel %vm84, %v273, 0
    %1456 = vmatprep.subr.mxu0 0.0
    %1457 = vmatpush1.xpose.msra.mxu0 %v1445
    %1458 = vmatprep.subr.mxu0 0.0
    %1459 = vmatpush1.xpose.msra.mxu0 %v1448
    %1460 = vmatprep.subr.mxu0 0.0
    %1461 = vmatpush1.xpose.msra.mxu0 %v1451
    %1462 = vmatprep.subr.mxu0 0.0
    %1463 = vmatpush1.xpose.msra.mxu0 %v1454
    %1464 = vmatprep.subr.mxu0 0.0
    %1465 = vmatpush1.xpose.msra.mxu0 0.0
    %1466 = vmatprep.subr.mxu0 0.0
    %1467 = vmatpush1.xpose.msra.mxu0 0.0
    %1468 = vmatprep.subr.mxu0 0.0
    %1469 = vmatpush1.xpose.msra.mxu0 0.0
    %1470 = vmatprep.subr.mxu0 0.0
    %1471 = vmatpush1.xpose.msra.mxu0 0.0
    %1472 = vmatprep.subr.mxu0 0.0
    %1473 = vmatpush1.xpose.msra.mxu0 0.0
    %1474 = vmatprep.subr.mxu0 0.0
    %1475 = vmatpush1.xpose.msra.mxu0 0.0
    %1476 = vmatprep.subr.mxu0 0.0
    %1477 = vmatpush1.xpose.msra.mxu0 0.0
    %1478 = vmatprep.subr.mxu0 0.0
    %1479 = vmatpush1.xpose.msra.mxu0 0.0
    %1480 = vmatprep.subr.mxu0 0.0
    %1481 = vmatpush1.xpose.msra.mxu0 0.0
    %1482 = vmatprep.subr.mxu0 0.0
    %1483 = vmatpush1.xpose.msra.mxu0 0.0
    %1484 = vmatprep.subr.mxu0 0.0
    %1485 = vmatpush1.xpose.msra.mxu0 0.0
    %1486 = vmatprep.subr.mxu0 0.0
    %1487 = vmatpush1.xpose.msra.mxu0 0.0
    %1488 = vmatprep.subr.mxu0 0.0
    %1489 = vmatpush1.xpose.msra.mxu0 0.0
    %1490 = vmatprep.subr.mxu0 0.0
    %1491 = vmatpush1.xpose.msra.mxu0 0.0
    %1492 = vmatprep.subr.mxu0 0.0
    %1493 = vmatpush1.xpose.msra.mxu0 0.0
    %1494 = vmatprep.subr.mxu0 0.0
    %1495 = vmatpush1.xpose.msra.mxu0 0.0
    %1496 = vmatprep.subr.mxu0 0.0
    %1497 = vmatpush1.xpose.msra.mxu0 0.0
    %1498 = vmatprep.subr.mxu0 0.0
    %1499 = vmatpush1.xpose.msra.mxu0 0.0
    %1500 = vmatprep.subr.mxu0 0.0
    %1501 = vmatpush1.xpose.msra.mxu0 0.0
    %1502 = vmatprep.subr.mxu0 0.0
    %1503 = vmatpush1.xpose.msra.mxu0 0.0
    %1504 = vmatprep.subr.mxu0 0.0
    %1505 = vmatpush1.xpose.msra.mxu0 0.0
    %1506 = vmatprep.subr.mxu0 0.0
    %1507 = vmatpush1.xpose.msra.mxu0 0.0
    %1508 = vmatprep.subr.mxu0 0.0
    %1509 = vmatpush1.xpose.msra.mxu0 0.0
    %1510 = vmatprep.subr.mxu0 0.0
    %1511 = vmatpush1.xpose.msra.mxu0 0.0
    %1512 = vmatprep.subr.mxu0 0.0
    %1513 = vmatpush1.xpose.msra.mxu0 0.0
    %1514 = vmatprep.subr.mxu0 0.0
    %1515 = vmatpush1.xpose.msra.mxu0 0.0
    %1516 = vmatprep.subr.mxu0 0.0
    %1517 = vmatpush1.xpose.msra.mxu0 0.0
    %1518 = vmatprep.subr.mxu0 0.0
    %1519 = vmatpush1.xpose.msra.mxu0 0.0
    %1520 = vmatprep.mubr.f32.mxu0 0.0
    %1521 = vmatmul.mubr.f32.gmra.mrb[0].mxu0 %v1433
    %v1522 = vpop.f32.mrb[0].mxu0
    %v1523 = vadd.f32 %v364, %v1522
    %v1524 = vpop.f32.mrb[0].mxu0
    %1525 = vmatprep.mubr.f32.mxu0 0.0
    %1526 = vmatmul.mubr.f32.gmra.mrb[0].mxu0 %v1436
    %v1527 = vpop.f32.mrb[0].mxu0
    %v1528 = vadd.f32 %v365, %v1527
    %v1529 = vpop.f32.mrb[0].mxu0
    %1530 = vmatprep.mubr.f32.mxu0 0.0
    %1531 = vmatmul.mubr.f32.gmra.mrb[0].mxu0 %v1439
    %v1532 = vpop.f32.mrb[0].mxu0
    %v1533 = vadd.f32 %v366, %v1532
    %v1534 = vpop.f32.mrb[0].mxu0
    %1535 = vmatprep.mubr.f32.mxu0 0.0
    %1536 = vmatmul.mubr.f32.gmra.mrb[0].mxu0 %v1442
    %v1537 = vpop.f32.mrb[0].mxu0
    %v1538 = vadd.f32 %v367, %v1537
    %v1539 = vpop.f32.mrb[0].mxu0
    %1540 = vdwg.mxu0
    %v1541 = vsel %vm84, %v1523, -inf
    %1542 = vmax.xlane.f32.xlu0 %v1541
    %v1543 = vpop.xlane.xlu0 %1542
    %v1544 = vsel %vm84, %v1528, -inf
    %1545 = vmax.xlane.f32.xlu0 %v1544
    %v1546 = vpop.xlane.xlu0 %1545
    %v1547 = vsel %vm84, %v1533, -inf
    %1548 = vmax.xlane.f32.xlu0 %v1547
    %v1549 = vpop.xlane.xlu0 %1548
    %v1550 = vsel %vm84, %v1538, -inf
    %1551 = vmax.xlane.f32.xlu0 %v1550
    %v1552 = vpop.xlane.xlu0 %1551
    %v1553 = vsub.f32 %v1523, %v1543
    %v1554 = vsub.f32 %v1528, %v1546
    %v1555 = vsub.f32 %v1533, %v1549
    %v1556 = vsub.f32 %v1538, %v1552
    %v1557 = vmul.f32 %v1553, 1.442695
    %v1558 = vpow.pop %v1557
    %v1559 = vmul.f32 %v1554, 1.442695
    %v1560 = vpow.pop %v1559
    %v1561 = vmul.f32 %v1555, 1.442695
    %v1562 = vpow.pop %v1561
    %v1563 = vmul.f32 %v1556, 1.442695
    %v1564 = vpow.pop %v1563
    %v1565 = vsel %vm84, %v1558, 0.0
    %1566 = vadd.xlane.f32.xlu0 %v1565
    %v1567 = vpop.xlane.xlu0 %1566
    %v1568 = vsel %vm84, %v1560, 0.0
    %1569 = vadd.xlane.f32.xlu0 %v1568
    %v1570 = vpop.xlane.xlu0 %1569
    %v1571 = vsel %vm84, %v1562, 0.0
    %1572 = vadd.xlane.f32.xlu0 %v1571
    %v1573 = vpop.xlane.xlu0 %1572
    %v1574 = vsel %vm84, %v1564, 0.0
    %1575 = vadd.xlane.f32.xlu0 %v1574
    %v1576 = vpop.xlane.xlu0 %1575
    %v1577 = vrcp.pop %v1567
    %v1578 = vmul.f32 %v1558, %v1577
    %v1579 = vrcp.pop %v1570
    %v1580 = vmul.f32 %v1560, %v1579
    %v1581 = vrcp.pop %v1573
    %v1582 = vmul.f32 %v1562, %v1581
    %v1583 = vrcp.pop %v1576
    %v1584 = vmul.f32 %v1564, %v1583
    %v1586 = vsel %vm84, %v1578, 0
    %v1589 = vsel %vm84, %v1580, 0
    %v1592 = vsel %vm84, %v1582, 0
    %v1595 = vsel %vm84, %v1584, 0
    %1597 = vmatprep.subr.mxu0 0.0
    %1598 = vmatpush1.msra.mxu0 %v344
    %1599 = vmatprep.subr.mxu0 0.0
    %1600 = vmatpush1.msra.mxu0 %v350
    %1601 = vmatprep.subr.mxu0 0.0
    %1602 = vmatpush1.msra.mxu0 %v356
    %1603 = vmatprep.subr.mxu0 0.0
    %1604 = vmatpush1.msra.mxu0 %v362
    %1605 = vmatprep.subr.mxu0 0.0
    %1606 = vmatpush1.msra.mxu0 0.0
    %1607 = vmatprep.subr.mxu0 0.0
    %1608 = vmatpush1.msra.mxu0 0.0
    %1609 = vmatprep.subr.mxu0 0.0
    %1610 = vmatpush1.msra.mxu0 0.0
    %1611 = vmatprep.subr.mxu0 0.0
    %1612 = vmatpush1.msra.mxu0 0.0
    %1613 = vmatprep.subr.mxu0 0.0
    %1614 = vmatpush1.msra.mxu0 0.0
    %1615 = vmatprep.subr.mxu0 0.0
    %1616 = vmatpush1.msra.mxu0 0.0
    %1617 = vmatprep.subr.mxu0 0.0
    %1618 = vmatpush1.msra.mxu0 0.0
    %1619 = vmatprep.subr.mxu0 0.0
    %1620 = vmatpush1.msra.mxu0 0.0
    %1621 = vmatprep.subr.mxu0 0.0
    %1622 = vmatpush1.msra.mxu0 0.0
    %1623 = vmatprep.subr.mxu0 0.0
    %1624 = vmatpush1.msra.mxu0 0.0
    %1625 = vmatprep.subr.mxu0 0.0
    %1626 = vmatpush1.msra.mxu0 0.0
    %1627 = vmatprep.subr.mxu0 0.0
    %1628 = vmatpush1.msra.mxu0 0.0
    %1629 = vmatprep.subr.mxu0 0.0
    %1630 = vmatpush1.msra.mxu0 0.0
    %1631 = vmatprep.subr.mxu0 0.0
    %1632 = vmatpush1.msra.mxu0 0.0
    %1633 = vmatprep.subr.mxu0 0.0
    %1634 = vmatpush1.msra.mxu0 0.0
    %1635 = vmatprep.subr.mxu0 0.0
    %1636 = vmatpush1.msra.mxu0 0.0
    %1637 = vmatprep.subr.mxu0 0.0
    %1638 = vmatpush1.msra.mxu0 0.0
    %1639 = vmatprep.subr.mxu0 0.0
    %1640 = vmatpush1.msra.mxu0 0.0
    %1641 = vmatprep.subr.mxu0 0.0
    %1642 = vmatpush1.msra.mxu0 0.0
    %1643 = vmatprep.subr.mxu0 0.0
    %1644 = vmatpush1.msra.mxu0 0.0
    %1645 = vmatprep.subr.mxu0 0.0
    %1646 = vmatpush1.msra.mxu0 0.0
    %1647 = vmatprep.subr.mxu0 0.0
    %1648 = vmatpush1.msra.mxu0 0.0
    %1649 = vmatprep.subr.mxu0 0.0
    %1650 = vmatpush1.msra.mxu0 0.0
    %1651 = vmatprep.subr.mxu0 0.0
    %1652 = vmatpush1.msra.mxu0 0.0
    %1653 = vmatprep.subr.mxu0 0.0
    %1654 = vmatpush1.msra.mxu0 0.0
    %1655 = vmatprep.subr.mxu0 0.0
    %1656 = vmatpush1.msra.mxu0 0.0
    %1657 = vmatprep.subr.mxu0 0.0
    %1658 = vmatpush1.msra.mxu0 0.0
    %1659 = vmatprep.subr.mxu0 0.0
    %1660 = vmatpush1.msra.mxu0 0.0
    %1661 = vmatprep.mubr.f32.mxu0 0.0
    %1662 = vmatmul.mubr.f32.gmra.mrb[0].mxu0 %v1586
    %v1663 = vpop.f32.mrb[0].mxu0
    %v1664 = vadd.f32 0.0, %v1663
    %v1665 = vpop.f32.mrb[0].mxu0
    %1666 = vmatprep.mubr.f32.mxu0 0.0
    %1667 = vmatmul.mubr.f32.gmra.mrb[0].mxu0 %v1589
    %v1668 = vpop.f32.mrb[0].mxu0
    %v1669 = vadd.f32 0.0, %v1668
    %v1670 = vpop.f32.mrb[0].mxu0
    %1671 = vmatprep.mubr.f32.mxu0 0.0
    %1672 = vmatmul.mubr.f32.gmra.mrb[0].mxu0 %v1592
    %v1673 = vpop.f32.mrb[0].mxu0
    %v1674 = vadd.f32 0.0, %v1673
    %v1675 = vpop.f32.mrb[0].mxu0
    %1676 = vmatprep.mubr.f32.mxu0 0.0
    %1677 = vmatmul.mubr.f32.gmra.mrb[0].mxu0 %v1595
    %v1678 = vpop.f32.mrb[0].mxu0
    %v1679 = vadd.f32 0.0, %v1678
    %v1680 = vpop.f32.mrb[0].mxu0
    %1681 = vdwg.mxu0
    %1682 = vrot.lane.b32.xlu0 %v166, 96
    %v1683 = vpop.permute.xlu0 %1682
    %1684 = vrot.lane.b32.xlu0 %v172, 96
    %v1685 = vpop.permute.xlu0 %1684
    %1686 = vrot.lane.b32.xlu0 %v178, 96
    %v1687 = vpop.permute.xlu0 %1686
    %1688 = vrot.lane.b32.xlu0 %v184, 96
    %v1689 = vpop.permute.xlu0 %1688
    %1690 = vrot.lane.b32.xlu0 %v255, 96
    %v1691 = vpop.permute.xlu0 %1690
    %1692 = vrot.lane.b32.xlu0 %v261, 96
    %v1693 = vpop.permute.xlu0 %1692
    %1694 = vrot.lane.b32.xlu0 %v267, 96
    %v1695 = vpop.permute.xlu0 %1694
    %1696 = vrot.lane.b32.xlu0 %v273, 96
    %v1697 = vpop.permute.xlu0 %1696
    %v1698 = vsel %vm84, %v1683, 0
    %v1700 = vsel %vm84, %v1685, 0
    %v1702 = vsel %vm84, %v1687, 0
    %v1704 = vsel %vm84, %v1689, 0
    %v1706 = vsel %vm84, %v1691, 0
    %v1708 = vsel %vm84, %v1693, 0
    %v1710 = vsel %vm84, %v1695, 0
    %v1712 = vsel %vm84, %v1697, 0
    %1714 = vmatprep.subr.mxu0 0.0
    %1715 = vmatpush1.xpose.msra.mxu0 %v1706
    %1716 = vmatprep.subr.mxu0 0.0
    %1717 = vmatpush1.xpose.msra.mxu0 %v1708
    %1718 = vmatprep.subr.mxu0 0.0
    %1719 = vmatpush1.xpose.msra.mxu0 %v1710
    %1720 = vmatprep.subr.mxu0 0.0
    %1721 = vmatpush1.xpose.msra.mxu0 %v1712
    %1722 = vmatprep.subr.mxu0 0.0
    %1723 = vmatpush1.xpose.msra.mxu0 0.0
    %1724 = vmatprep.subr.mxu0 0.0
    %1725 = vmatpush1.xpose.msra.mxu0 0.0
    %1726 = vmatprep.subr.mxu0 0.0
    %1727 = vmatpush1.xpose.msra.mxu0 0.0
    %1728 = vmatprep.subr.mxu0 0.0
    %1729 = vmatpush1.xpose.msra.mxu0 0.0
    %1730 = vmatprep.subr.mxu0 0.0
    %1731 = vmatpush1.xpose.msra.mxu0 0.0
    %1732 = vmatprep.subr.mxu0 0.0
    %1733 = vmatpush1.xpose.msra.mxu0 0.0
    %1734 = vmatprep.subr.mxu0 0.0
    %1735 = vmatpush1.xpose.msra.mxu0 0.0
    %1736 = vmatprep.subr.mxu0 0.0
    %1737 = vmatpush1.xpose.msra.mxu0 0.0
    %1738 = vmatprep.subr.mxu0 0.0
    %1739 = vmatpush1.xpose.msra.mxu0 0.0
    %1740 = vmatprep.subr.mxu0 0.0
    %1741 = vmatpush1.xpose.msra.mxu0 0.0
    %1742 = vmatprep.subr.mxu0 0.0
    %1743 = vmatpush1.xpose.msra.mxu0 0.0
    %1744 = vmatprep.subr.mxu0 0.0
    %1745 = vmatpush1.xpose.msra.mxu0 0.0
    %1746 = vmatprep.subr.mxu0 0.0
    %1747 = vmatpush1.xpose.msra.mxu0 0.0
    %1748 = vmatprep.subr.mxu0 0.0
    %1749 = vmatpush1.xpose.msra.mxu0 0.0
    %1750 = vmatprep.subr.mxu0 0.0
    %1751 = vmatpush1.xpose.msra.mxu0 0.0
    %1752 = vmatprep.subr.mxu0 0.0
    %1753 = vmatpush1.xpose.msra.mxu0 0.0
    %1754 = vmatprep.subr.mxu0 0.0
    %1755 = vmatpush1.xpose.msra.mxu0 0.0
    %1756 = vmatprep.subr.mxu0 0.0
    %1757 = vmatpush1.xpose.msra.mxu0 0.0
    %1758 = vmatprep.subr.mxu0 0.0
    %1759 = vmatpush1.xpose.msra.mxu0 0.0
    %1760 = vmatprep.subr.mxu0 0.0
    %1761 = vmatpush1.xpose.msra.mxu0 0.0
    %1762 = vmatprep.subr.mxu0 0.0
    %1763 = vmatpush1.xpose.msra.mxu0 0.0
    %1764 = vmatprep.subr.mxu0 0.0
    %1765 = vmatpush1.xpose.msra.mxu0 0.0
    %1766 = vmatprep.subr.mxu0 0.0
    %1767 = vmatpush1.xpose.msra.mxu0 0.0
    %1768 = vmatprep.subr.mxu0 0.0
    %1769 = vmatpush1.xpose.msra.mxu0 0.0
    %1770 = vmatprep.subr.mxu0 0.0
    %1771 = vmatpush1.xpose.msra.mxu0 0.0
    %1772 = vmatprep.subr.mxu0 0.0
    %1773 = vmatpush1.xpose.msra.mxu0 0.0
    %1774 = vmatprep.subr.mxu0 0.0
    %1775 = vmatpush1.xpose.msra.mxu0 0.0
    %1776 = vmatprep.subr.mxu0 0.0
    %1777 = vmatpush1.xpose.msra.mxu0 0.0
    %1778 = vmatprep.mubr.f32.mxu0 0.0
    %1779 = vmatmul.mubr.f32.gmra.mrb[0].mxu0 %v1698
    %v1780 = vpop.f32.mrb[0].mxu0
    %v1781 = vadd.f32 %v364, %v1780
    %v1782 = vpop.f32.mrb[0].mxu0
    %1783 = vmatprep.mubr.f32.mxu0 0.0
    %1784 = vmatmul.mubr.f32.gmra.mrb[0].mxu0 %v1700
    %v1785 = vpop.f32.mrb[0].mxu0
    %v1786 = vadd.f32 %v365, %v1785
    %v1787 = vpop.f32.mrb[0].mxu0
    %1788 = vmatprep.mubr.f32.mxu0 0.0
    %1789 = vmatmul.mubr.f32.gmra.mrb[0].mxu0 %v1702
    %v1790 = vpop.f32.mrb[0].mxu0
    %v1791 = vadd.f32 %v366, %v1790
    %v1792 = vpop.f32.mrb[0].mxu0
    %1793 = vmatprep.mubr.f32.mxu0 0.0
    %1794 = vmatmul.mubr.f32.gmra.mrb[0].mxu0 %v1704
    %v1795 = vpop.f32.mrb[0].mxu0
    %v1796 = vadd.f32 %v367, %v1795
    %v1797 = vpop.f32.mrb[0].mxu0
    %1798 = vdwg.mxu0
    %v1799 = vsel %vm84, %v1781, -inf
    %1800 = vmax.xlane.f32.xlu0 %v1799
    %v1801 = vpop.xlane.xlu0 %1800
    %v1802 = vsel %vm84, %v1786, -inf
    %1803 = vmax.xlane.f32.xlu0 %v1802
    %v1804 = vpop.xlane.xlu0 %1803
    %v1805 = vsel %vm84, %v1791, -inf
    %1806 = vmax.xlane.f32.xlu0 %v1805
    %v1807 = vpop.xlane.xlu0 %1806
    %v1808 = vsel %vm84, %v1796, -inf
    %1809 = vmax.xlane.f32.xlu0 %v1808
    %v1810 = vpop.xlane.xlu0 %1809
    %v1811 = vsub.f32 %v1781, %v1801
    %v1812 = vsub.f32 %v1786, %v1804
    %v1813 = vsub.f32 %v1791, %v1807
    %v1814 = vsub.f32 %v1796, %v1810
    %v1815 = vmul.f32 %v1811, 1.442695
    %v1816 = vpow.pop %v1815
    %v1817 = vmul.f32 %v1812, 1.442695
    %v1818 = vpow.pop %v1817
    %v1819 = vmul.f32 %v1813, 1.442695
    %v1820 = vpow.pop %v1819
    %v1821 = vmul.f32 %v1814, 1.442695
    %v1822 = vpow.pop %v1821
    %v1823 = vsel %vm84, %v1816, 0.0
    %1824 = vadd.xlane.f32.xlu0 %v1823
    %v1825 = vpop.xlane.xlu0 %1824
    %v1826 = vsel %vm84, %v1818, 0.0
    %1827 = vadd.xlane.f32.xlu0 %v1826
    %v1828 = vpop.xlane.xlu0 %1827
    %v1829 = vsel %vm84, %v1820, 0.0
    %1830 = vadd.xlane.f32.xlu0 %v1829
    %v1831 = vpop.xlane.xlu0 %1830
    %v1832 = vsel %vm84, %v1822, 0.0
    %1833 = vadd.xlane.f32.xlu0 %v1832
    %v1834 = vpop.xlane.xlu0 %1833
    %v1835 = vrcp.pop %v1825
    %v1836 = vmul.f32 %v1816, %v1835
    %v1837 = vrcp.pop %v1828
    %v1838 = vmul.f32 %v1818, %v1837
    %v1839 = vrcp.pop %v1831
    %v1840 = vmul.f32 %v1820, %v1839
    %v1841 = vrcp.pop %v1834
    %v1842 = vmul.f32 %v1822, %v1841
    %1847 = vrot.lane.b32.xlu0 %v344, 96
    %v1848 = vpop.permute.xlu0 %1847
    %1849 = vrot.lane.b32.xlu0 %v350, 96
    %v1850 = vpop.permute.xlu0 %1849
    %1851 = vrot.lane.b32.xlu0 %v356, 96
    %v1852 = vpop.permute.xlu0 %1851
    %1853 = vrot.lane.b32.xlu0 %v362, 96
    %v1854 = vpop.permute.xlu0 %1853
    %v1860 = vsel %vm84, %v1836, 0
    %v1863 = vsel %vm84, %v1838, 0
    %v1866 = vsel %vm84, %v1840, 0
    %v1869 = vsel %vm84, %v1842, 0
    %1871 = vmatprep.subr.mxu0 0.0
    %1872 = vmatpush1.msra.mxu0 %v1848
    %1873 = vmatprep.subr.mxu0 0.0
    %1874 = vmatpush1.msra.mxu0 %v1850
    %1875 = vmatprep.subr.mxu0 0.0
    %1876 = vmatpush1.msra.mxu0 %v1852
    %1877 = vmatprep.subr.mxu0 0.0
    %1878 = vmatpush1.msra.mxu0 %v1854
    %1879 = vmatprep.subr.mxu0 0.0
    %1880 = vmatpush1.msra.mxu0 0.0
    %1881 = vmatprep.subr.mxu0 0.0
    %1882 = vmatpush1.msra.mxu0 0.0
    %1883 = vmatprep.subr.mxu0 0.0
    %1884 = vmatpush1.msra.mxu0 0.0
    %1885 = vmatprep.subr.mxu0 0.0
    %1886 = vmatpush1.msra.mxu0 0.0
    %1887 = vmatprep.subr.mxu0 0.0
    %1888 = vmatpush1.msra.mxu0 0.0
    %1889 = vmatprep.subr.mxu0 0.0
    %1890 = vmatpush1.msra.mxu0 0.0
    %1891 = vmatprep.subr.mxu0 0.0
    %1892 = vmatpush1.msra.mxu0 0.0
    %1893 = vmatprep.subr.mxu0 0.0
    %1894 = vmatpush1.msra.mxu0 0.0
    %1895 = vmatprep.subr.mxu0 0.0
    %1896 = vmatpush1.msra.mxu0 0.0
    %1897 = vmatprep.subr.mxu0 0.0
    %1898 = vmatpush1.msra.mxu0 0.0
    %1899 = vmatprep.subr.mxu0 0.0
    %1900 = vmatpush1.msra.mxu0 0.0
    %1901 = vmatprep.subr.mxu0 0.0
    %1902 = vmatpush1.msra.mxu0 0.0
    %1903 = vmatprep.subr.mxu0 0.0
    %1904 = vmatpush1.msra.mxu0 0.0
    %1905 = vmatprep.subr.mxu0 0.0
    %1906 = vmatpush1.msra.mxu0 0.0
    %1907 = vmatprep.subr.mxu0 0.0
    %1908 = vmatpush1.msra.mxu0 0.0
    %1909 = vmatprep.subr.mxu0 0.0
    %1910 = vmatpush1.msra.mxu0 0.0
    %1911 = vmatprep.subr.mxu0 0.0
    %1912 = vmatpush1.msra.mxu0 0.0
    %1913 = vmatprep.subr.mxu0 0.0
    %1914 = vmatpush1.msra.mxu0 0.0
    %1915 = vmatprep.subr.mxu0 0.0
    %1916 = vmatpush1.msra.mxu0 0.0
    %1917 = vmatprep.subr.mxu0 0.0
    %1918 = vmatpush1.msra.mxu0 0.0
    %1919 = vmatprep.subr.mxu0 0.0
    %1920 = vmatpush1.msra.mxu0 0.0
    %1921 = vmatprep.subr.mxu0 0.0
    %1922 = vmatpush1.msra.mxu0 0.0
    %1923 = vmatprep.subr.mxu0 0.0
    %1924 = vmatpush1.msra.mxu0 0.0
    %1925 = vmatprep.subr.mxu0 0.0
    %1926 = vmatpush1.msra.mxu0 0.0
    %1927 = vmatprep.subr.mxu0 0.0
    %1928 = vmatpush1.msra.mxu0 0.0
    %1929 = vmatprep.subr.mxu0 0.0
    %1930 = vmatpush1.msra.mxu0 0.0
    %1931 = vmatprep.subr.mxu0 0.0
    %1932 = vmatpush1.msra.mxu0 0.0
    %1933 = vmatprep.subr.mxu0 0.0
    %1934 = vmatpush1.msra.mxu0 0.0
    %1935 = vmatprep.mubr.f32.mxu0 0.0
    %1936 = vmatmul.mubr.f32.gmra.mrb[0].mxu0 %v1860
    %v1937 = vpop.f32.mrb[0].mxu0
    %v1938 = vadd.f32 0.0, %v1937
    %v1939 = vpop.f32.mrb[0].mxu0
    %1940 = vmatprep.mubr.f32.mxu0 0.0
    %1941 = vmatmul.mubr.f32.gmra.mrb[0].mxu0 %v1863
    %v1942 = vpop.f32.mrb[0].mxu0
    %v1943 = vadd.f32 0.0, %v1942
    %v1944 = vpop.f32.mrb[0].mxu0
    %1945 = vmatprep.mubr.f32.mxu0 0.0
    %1946 = vmatmul.mubr.f32.gmra.mrb[0].mxu0 %v1866
    %v1947 = vpop.f32.mrb[0].mxu0
    %v1948 = vadd.f32 0.0, %v1947
    %v1949 = vpop.f32.mrb[0].mxu0
    %1950 = vmatprep.mubr.f32.mxu0 0.0
    %1951 = vmatmul.mubr.f32.gmra.mrb[0].mxu0 %v1869
    %v1952 = vpop.f32.mrb[0].mxu0
    %v1953 = vadd.f32 0.0, %v1952
    %v1954 = vpop.f32.mrb[0].mxu0
    %1955 = vdwg.mxu0
    %1956 = vrot.lane.b32.xlu0 %v166, 64
    %v1957 = vpop.permute.xlu0 %1956
    %1958 = vrot.lane.b32.xlu0 %v172, 64
    %v1959 = vpop.permute.xlu0 %1958
    %1960 = vrot.lane.b32.xlu0 %v178, 64
    %v1961 = vpop.permute.xlu0 %1960
    %1962 = vrot.lane.b32.xlu0 %v184, 64
    %v1963 = vpop.permute.xlu0 %1962
    %1964 = vrot.lane.b32.xlu0 %v255, 64
    %v1965 = vpop.permute.xlu0 %1964
    %1966 = vrot.lane.b32.xlu0 %v261, 64
    %v1967 = vpop.permute.xlu0 %1966
    %1968 = vrot.lane.b32.xlu0 %v267, 64
    %v1969 = vpop.permute.xlu0 %1968
    %1970 = vrot.lane.b32.xlu0 %v273, 64
    %v1971 = vpop.permute.xlu0 %1970
    %v1972 = vsel %vm84, %v1957, 0
    %v1974 = vsel %vm84, %v1959, 0
    %v1976 = vsel %vm84, %v1961, 0
    %v1978 = vsel %vm84, %v1963, 0
    %v1980 = vsel %vm84, %v1965, 0
    %v1982 = vsel %vm84, %v1967, 0
    %v1984 = vsel %vm84, %v1969, 0
    %v1986 = vsel %vm84, %v1971, 0
    %1988 = vmatprep.subr.mxu0 0.0
    %1989 = vmatpush1.xpose.msra.mxu0 %v1980
    %1990 = vmatprep.subr.mxu0 0.0
    %1991 = vmatpush1.xpose.msra.mxu0 %v1982
    %1992 = vmatprep.subr.mxu0 0.0
    %1993 = vmatpush1.xpose.msra.mxu0 %v1984
    %1994 = vmatprep.subr.mxu0 0.0
    %1995 = vmatpush1.xpose.msra.mxu0 %v1986
    %1996 = vmatprep.subr.mxu0 0.0
    %1997 = vmatpush1.xpose.msra.mxu0 0.0
    %1998 = vmatprep.subr.mxu0 0.0
    %1999 = vmatpush1.xpose.msra.mxu0 0.0
    %2000 = vmatprep.subr.mxu0 0.0
    %2001 = vmatpush1.xpose.msra.mxu0 0.0
    %2002 = vmatprep.subr.mxu0 0.0
    %2003 = vmatpush1.xpose.msra.mxu0 0.0
    %2004 = vmatprep.subr.mxu0 0.0
    %2005 = vmatpush1.xpose.msra.mxu0 0.0
    %2006 = vmatprep.subr.mxu0 0.0
    %2007 = vmatpush1.xpose.msra.mxu0 0.0
    %2008 = vmatprep.subr.mxu0 0.0
    %2009 = vmatpush1.xpose.msra.mxu0 0.0
    %2010 = vmatprep.subr.mxu0 0.0
    %2011 = vmatpush1.xpose.msra.mxu0 0.0
    %2012 = vmatprep.subr.mxu0 0.0
    %2013 = vmatpush1.xpose.msra.mxu0 0.0
    %2014 = vmatprep.subr.mxu0 0.0
    %2015 = vmatpush1.xpose.msra.mxu0 0.0
    %2016 = vmatprep.subr.mxu0 0.0
    %2017 = vmatpush1.xpose.msra.mxu0 0.0
    %2018 = vmatprep.subr.mxu0 0.0
    %2019 = vmatpush1.xpose.msra.mxu0 0.0
    %2020 = vmatprep.subr.mxu0 0.0
    %2021 = vmatpush1.xpose.msra.mxu0 0.0
    %2022 = vmatprep.subr.mxu0 0.0
    %2023 = vmatpush1.xpose.msra.mxu0 0.0
    %2024 = vmatprep.subr.mxu0 0.0
    %2025 = vmatpush1.xpose.msra.mxu0 0.0
    %2026 = vmatprep.subr.mxu0 0.0
    %2027 = vmatpush1.xpose.msra.mxu0 0.0
    %2028 = vmatprep.subr.mxu0 0.0
    %2029 = vmatpush1.xpose.msra.mxu0 0.0
    %2030 = vmatprep.subr.mxu0 0.0
    %2031 = vmatpush1.xpose.msra.mxu0 0.0
    %2032 = vmatprep.subr.mxu0 0.0
    %2033 = vmatpush1.xpose.msra.mxu0 0.0
    %2034 = vmatprep.subr.mxu0 0.0
    %2035 = vmatpush1.xpose.msra.mxu0 0.0
    %2036 = vmatprep.subr.mxu0 0.0
    %2037 = vmatpush1.xpose.msra.mxu0 0.0
    %2038 = vmatprep.subr.mxu0 0.0
    %2039 = vmatpush1.xpose.msra.mxu0 0.0
    %2040 = vmatprep.subr.mxu0 0.0
    %2041 = vmatpush1.xpose.msra.mxu0 0.0
    %2042 = vmatprep.subr.mxu0 0.0
    %2043 = vmatpush1.xpose.msra.mxu0 0.0
    %2044 = vmatprep.subr.mxu0 0.0
    %2045 = vmatpush1.xpose.msra.mxu0 0.0
    %2046 = vmatprep.subr.mxu0 0.0
    %2047 = vmatpush1.xpose.msra.mxu0 0.0
    %2048 = vmatprep.subr.mxu0 0.0
    %2049 = vmatpush1.xpose.msra.mxu0 0.0
    %2050 = vmatprep.subr.mxu0 0.0
    %2051 = vmatpush1.xpose.msra.mxu0 0.0
    %2052 = vmatprep.mubr.f32.mxu0 0.0
    %2053 = vmatmul.mubr.f32.gmra.mrb[0].mxu0 %v1972
    %v2054 = vpop.f32.mrb[0].mxu0
    %v2055 = vadd.f32 %v364, %v2054
    %v2056 = vpop.f32.mrb[0].mxu0
    %2057 = vmatprep.mubr.f32.mxu0 0.0
    %2058 = vmatmul.mubr.f32.gmra.mrb[0].mxu0 %v1974
    %v2059 = vpop.f32.mrb[0].mxu0
    %v2060 = vadd.f32 %v365, %v2059
    %v2061 = vpop.f32.mrb[0].mxu0
    %2062 = vmatprep.mubr.f32.mxu0 0.0
    %2063 = vmatmul.mubr.f32.gmra.mrb[0].mxu0 %v1976
    %v2064 = vpop.f32.mrb[0].mxu0
    %v2065 = vadd.f32 %v366, %v2064
    %v2066 = vpop.f32.mrb[0].mxu0
    %2067 = vmatprep.mubr.f32.mxu0 0.0
    %2068 = vmatmul.mubr.f32.gmra.mrb[0].mxu0 %v1978
    %v2069 = vpop.f32.mrb[0].mxu0
    %v2070 = vadd.f32 %v367, %v2069
    %v2071 = vpop.f32.mrb[0].mxu0
    %2072 = vdwg.mxu0
    %v2073 = vsel %vm84, %v2055, -inf
    %2074 = vmax.xlane.f32.xlu0 %v2073
    %v2075 = vpop.xlane.xlu0 %2074
    %v2076 = vsel %vm84, %v2060, -inf
    %2077 = vmax.xlane.f32.xlu0 %v2076
    %v2078 = vpop.xlane.xlu0 %2077
    %v2079 = vsel %vm84, %v2065, -inf
    %2080 = vmax.xlane.f32.xlu0 %v2079
    %v2081 = vpop.xlane.xlu0 %2080
    %v2082 = vsel %vm84, %v2070, -inf
    %2083 = vmax.xlane.f32.xlu0 %v2082
    %v2084 = vpop.xlane.xlu0 %2083
    %v2085 = vsub.f32 %v2055, %v2075
    %v2086 = vsub.f32 %v2060, %v2078
    %v2087 = vsub.f32 %v2065, %v2081
    %v2088 = vsub.f32 %v2070, %v2084
    %v2089 = vmul.f32 %v2085, 1.442695
    %v2090 = vpow.pop %v2089
    %v2091 = vmul.f32 %v2086, 1.442695
    %v2092 = vpow.pop %v2091
    %v2093 = vmul.f32 %v2087, 1.442695
    %v2094 = vpow.pop %v2093
    %v2095 = vmul.f32 %v2088, 1.442695
    %v2096 = vpow.pop %v2095
    %v2097 = vsel %vm84, %v2090, 0.0
    %2098 = vadd.xlane.f32.xlu0 %v2097
    %v2099 = vpop.xlane.xlu0 %2098
    %v2100 = vsel %vm84, %v2092, 0.0
    %2101 = vadd.xlane.f32.xlu0 %v2100
    %v2102 = vpop.xlane.xlu0 %2101
    %v2103 = vsel %vm84, %v2094, 0.0
    %2104 = vadd.xlane.f32.xlu0 %v2103
    %v2105 = vpop.xlane.xlu0 %2104
    %v2106 = vsel %vm84, %v2096, 0.0
    %2107 = vadd.xlane.f32.xlu0 %v2106
    %v2108 = vpop.xlane.xlu0 %2107
    %v2109 = vrcp.pop %v2099
    %v2110 = vmul.f32 %v2090, %v2109
    %v2111 = vrcp.pop %v2102
    %v2112 = vmul.f32 %v2092, %v2111
    %v2113 = vrcp.pop %v2105
    %v2114 = vmul.f32 %v2094, %v2113
    %v2115 = vrcp.pop %v2108
    %v2116 = vmul.f32 %v2096, %v2115
    %2117 = vrot.lane.b32.xlu0 %v344, 64
    %v2118 = vpop.permute.xlu0 %2117
    %2119 = vrot.lane.b32.xlu0 %v350, 64
    %v2120 = vpop.permute.xlu0 %2119
    %2121 = vrot.lane.b32.xlu0 %v356, 64
    %v2122 = vpop.permute.xlu0 %2121
    %2123 = vrot.lane.b32.xlu0 %v362, 64
    %v2124 = vpop.permute.xlu0 %2123
    %v2130 = vsel %vm84, %v2110, 0
    %v2133 = vsel %vm84, %v2112, 0
    %v2136 = vsel %vm84, %v2114, 0
    %v2139 = vsel %vm84, %v2116, 0
    %2141 = vmatprep.subr.mxu0 0.0
    %2142 = vmatpush1.msra.mxu0 %v2118
    %2143 = vmatprep.subr.mxu0 0.0
    %2144 = vmatpush1.msra.mxu0 %v2120
    %2145 = vmatprep.subr.mxu0 0.0
    %2146 = vmatpush1.msra.mxu0 %v2122
    %2147 = vmatprep.subr.mxu0 0.0
    %2148 = vmatpush1.msra.mxu0 %v2124
    %2149 = vmatprep.subr.mxu0 0.0
    %2150 = vmatpush1.msra.mxu0 0.0
    %2151 = vmatprep.subr.mxu0 0.0
    %2152 = vmatpush1.msra.mxu0 0.0
    %2153 = vmatprep.subr.mxu0 0.0
    %2154 = vmatpush1.msra.mxu0 0.0
    %2155 = vmatprep.subr.mxu0 0.0
    %2156 = vmatpush1.msra.mxu0 0.0
    %2157 = vmatprep.subr.mxu0 0.0
    %2158 = vmatpush1.msra.mxu0 0.0
    %2159 = vmatprep.subr.mxu0 0.0
    %2160 = vmatpush1.msra.mxu0 0.0
    %2161 = vmatprep.subr.mxu0 0.0
    %2162 = vmatpush1.msra.mxu0 0.0
    %2163 = vmatprep.subr.mxu0 0.0
    %2164 = vmatpush1.msra.mxu0 0.0
    %2165 = vmatprep.subr.mxu0 0.0
    %2166 = vmatpush1.msra.mxu0 0.0
    %2167 = vmatprep.subr.mxu0 0.0
    %2168 = vmatpush1.msra.mxu0 0.0
    %2169 = vmatprep.subr.mxu0 0.0
    %2170 = vmatpush1.msra.mxu0 0.0
    %2171 = vmatprep.subr.mxu0 0.0
    %2172 = vmatpush1.msra.mxu0 0.0
    %2173 = vmatprep.subr.mxu0 0.0
    %2174 = vmatpush1.msra.mxu0 0.0
    %2175 = vmatprep.subr.mxu0 0.0
    %2176 = vmatpush1.msra.mxu0 0.0
    %2177 = vmatprep.subr.mxu0 0.0
    %2178 = vmatpush1.msra.mxu0 0.0
    %2179 = vmatprep.subr.mxu0 0.0
    %2180 = vmatpush1.msra.mxu0 0.0
    %2181 = vmatprep.subr.mxu0 0.0
    %2182 = vmatpush1.msra.mxu0 0.0
    %2183 = vmatprep.subr.mxu0 0.0
    %2184 = vmatpush1.msra.mxu0 0.0
    %2185 = vmatprep.subr.mxu0 0.0
    %2186 = vmatpush1.msra.mxu0 0.0
    %2187 = vmatprep.subr.mxu0 0.0
    %2188 = vmatpush1.msra.mxu0 0.0
    %2189 = vmatprep.subr.mxu0 0.0
    %2190 = vmatpush1.msra.mxu0 0.0
    %2191 = vmatprep.subr.mxu0 0.0
    %2192 = vmatpush1.msra.mxu0 0.0
    %2193 = vmatprep.subr.mxu0 0.0
    %2194 = vmatpush1.msra.mxu0 0.0
    %2195 = vmatprep.subr.mxu0 0.0
    %2196 = vmatpush1.msra.mxu0 0.0
    %2197 = vmatprep.subr.mxu0 0.0
    %2198 = vmatpush1.msra.mxu0 0.0
    %2199 = vmatprep.subr.mxu0 0.0
    %2200 = vmatpush1.msra.mxu0 0.0
    %2201 = vmatprep.subr.mxu0 0.0
    %2202 = vmatpush1.msra.mxu0 0.0
    %2203 = vmatprep.subr.mxu0 0.0
    %2204 = vmatpush1.msra.mxu0 0.0
    %2205 = vmatprep.mubr.f32.mxu0 0.0
    %2206 = vmatmul.mubr.f32.gmra.mrb[0].mxu0 %v2130
    %v2207 = vpop.f32.mrb[0].mxu0
    %v2208 = vadd.f32 0.0, %v2207
    %v2209 = vpop.f32.mrb[0].mxu0
    %2210 = vmatprep.mubr.f32.mxu0 0.0
    %2211 = vmatmul.mubr.f32.gmra.mrb[0].mxu0 %v2133
    %v2212 = vpop.f32.mrb[0].mxu0
    %v2213 = vadd.f32 0.0, %v2212
    %v2214 = vpop.f32.mrb[0].mxu0
    %2215 = vmatprep.mubr.f32.mxu0 0.0
    %2216 = vmatmul.mubr.f32.gmra.mrb[0].mxu0 %v2136
    %v2217 = vpop.f32.mrb[0].mxu0
    %v2218 = vadd.f32 0.0, %v2217
    %v2219 = vpop.f32.mrb[0].mxu0
    %2220 = vmatprep.mubr.f32.mxu0 0.0
    %2221 = vmatmul.mubr.f32.gmra.mrb[0].mxu0 %v2139
    %v2222 = vpop.f32.mrb[0].mxu0
    %v2223 = vadd.f32 0.0, %v2222
    %v2224 = vpop.f32.mrb[0].mxu0
    %2225 = vdwg.mxu0
    %2226 = vrot.lane.b32.xlu0 %v166, 32
    %v2227 = vpop.permute.xlu0 %2226
    %2228 = vrot.lane.b32.xlu0 %v172, 32
    %v2229 = vpop.permute.xlu0 %2228
    %2230 = vrot.lane.b32.xlu0 %v178, 32
    %v2231 = vpop.permute.xlu0 %2230
    %2232 = vrot.lane.b32.xlu0 %v184, 32
    %v2233 = vpop.permute.xlu0 %2232
    %2234 = vrot.lane.b32.xlu0 %v255, 32
    %v2235 = vpop.permute.xlu0 %2234
    %2236 = vrot.lane.b32.xlu0 %v261, 32
    %v2237 = vpop.permute.xlu0 %2236
    %2238 = vrot.lane.b32.xlu0 %v267, 32
    %v2239 = vpop.permute.xlu0 %2238
    %2240 = vrot.lane.b32.xlu0 %v273, 32
    %v2241 = vpop.permute.xlu0 %2240
    %v2242 = vsel %vm84, %v2227, 0
    %v2244 = vsel %vm84, %v2229, 0
    %v2246 = vsel %vm84, %v2231, 0
    %v2248 = vsel %vm84, %v2233, 0
    %v2250 = vsel %vm84, %v2235, 0
    %v2252 = vsel %vm84, %v2237, 0
    %v2254 = vsel %vm84, %v2239, 0
    %v2256 = vsel %vm84, %v2241, 0
    %2258 = vmatprep.subr.mxu0 0.0
    %2259 = vmatpush1.xpose.msra.mxu0 %v2250
    %2260 = vmatprep.subr.mxu0 0.0
    %2261 = vmatpush1.xpose.msra.mxu0 %v2252
    %2262 = vmatprep.subr.mxu0 0.0
    %2263 = vmatpush1.xpose.msra.mxu0 %v2254
    %2264 = vmatprep.subr.mxu0 0.0
    %2265 = vmatpush1.xpose.msra.mxu0 %v2256
    %2266 = vmatprep.subr.mxu0 0.0
    %2267 = vmatpush1.xpose.msra.mxu0 0.0
    %2268 = vmatprep.subr.mxu0 0.0
    %2269 = vmatpush1.xpose.msra.mxu0 0.0
    %2270 = vmatprep.subr.mxu0 0.0
    %2271 = vmatpush1.xpose.msra.mxu0 0.0
    %2272 = vmatprep.subr.mxu0 0.0
    %2273 = vmatpush1.xpose.msra.mxu0 0.0
    %2274 = vmatprep.subr.mxu0 0.0
    %2275 = vmatpush1.xpose.msra.mxu0 0.0
    %2276 = vmatprep.subr.mxu0 0.0
    %2277 = vmatpush1.xpose.msra.mxu0 0.0
    %2278 = vmatprep.subr.mxu0 0.0
    %2279 = vmatpush1.xpose.msra.mxu0 0.0
    %2280 = vmatprep.subr.mxu0 0.0
    %2281 = vmatpush1.xpose.msra.mxu0 0.0
    %2282 = vmatprep.subr.mxu0 0.0
    %2283 = vmatpush1.xpose.msra.mxu0 0.0
    %2284 = vmatprep.subr.mxu0 0.0
    %2285 = vmatpush1.xpose.msra.mxu0 0.0
    %2286 = vmatprep.subr.mxu0 0.0
    %2287 = vmatpush1.xpose.msra.mxu0 0.0
    %2288 = vmatprep.subr.mxu0 0.0
    %2289 = vmatpush1.xpose.msra.mxu0 0.0
    %2290 = vmatprep.subr.mxu0 0.0
    %2291 = vmatpush1.xpose.msra.mxu0 0.0
    %2292 = vmatprep.subr.mxu0 0.0
    %2293 = vmatpush1.xpose.msra.mxu0 0.0
    %2294 = vmatprep.subr.mxu0 0.0
    %2295 = vmatpush1.xpose.msra.mxu0 0.0
    %2296 = vmatprep.subr.mxu0 0.0
    %2297 = vmatpush1.xpose.msra.mxu0 0.0
    %2298 = vmatprep.subr.mxu0 0.0
    %2299 = vmatpush1.xpose.msra.mxu0 0.0
    %2300 = vmatprep.subr.mxu0 0.0
    %2301 = vmatpush1.xpose.msra.mxu0 0.0
    %2302 = vmatprep.subr.mxu0 0.0
    %2303 = vmatpush1.xpose.msra.mxu0 0.0
    %2304 = vmatprep.subr.mxu0 0.0
    %2305 = vmatpush1.xpose.msra.mxu0 0.0
    %2306 = vmatprep.subr.mxu0 0.0
    %2307 = vmatpush1.xpose.msra.mxu0 0.0
    %2308 = vmatprep.subr.mxu0 0.0
    %2309 = vmatpush1.xpose.msra.mxu0 0.0
    %2310 = vmatprep.subr.mxu0 0.0
    %2311 = vmatpush1.xpose.msra.mxu0 0.0
    %2312 = vmatprep.subr.mxu0 0.0
    %2313 = vmatpush1.xpose.msra.mxu0 0.0
    %2314 = vmatprep.subr.mxu0 0.0
    %2315 = vmatpush1.xpose.msra.mxu0 0.0
    %2316 = vmatprep.subr.mxu0 0.0
    %2317 = vmatpush1.xpose.msra.mxu0 0.0
    %2318 = vmatprep.subr.mxu0 0.0
    %2319 = vmatpush1.xpose.msra.mxu0 0.0
    %2320 = vmatprep.subr.mxu0 0.0
    %2321 = vmatpush1.xpose.msra.mxu0 0.0
    %2322 = vmatprep.mubr.f32.mxu0 0.0
    %2323 = vmatmul.mubr.f32.gmra.mrb[0].mxu0 %v2242
    %v2324 = vpop.f32.mrb[0].mxu0
    %v2325 = vadd.f32 %v364, %v2324
    %v2326 = vpop.f32.mrb[0].mxu0
    %2327 = vmatprep.mubr.f32.mxu0 0.0
    %2328 = vmatmul.mubr.f32.gmra.mrb[0].mxu0 %v2244
    %v2329 = vpop.f32.mrb[0].mxu0
    %v2330 = vadd.f32 %v365, %v2329
    %v2331 = vpop.f32.mrb[0].mxu0
    %2332 = vmatprep.mubr.f32.mxu0 0.0
    %2333 = vmatmul.mubr.f32.gmra.mrb[0].mxu0 %v2246
    %v2334 = vpop.f32.mrb[0].mxu0
    %v2335 = vadd.f32 %v366, %v2334
    %v2336 = vpop.f32.mrb[0].mxu0
    %2337 = vmatprep.mubr.f32.mxu0 0.0
    %2338 = vmatmul.mubr.f32.gmra.mrb[0].mxu0 %v2248
    %v2339 = vpop.f32.mrb[0].mxu0
    %v2340 = vadd.f32 %v367, %v2339
    %v2341 = vpop.f32.mrb[0].mxu0
    %2342 = vdwg.mxu0
    %v2343 = vsel %vm84, %v2325, -inf
    %2344 = vmax.xlane.f32.xlu0 %v2343
    %v2345 = vpop.xlane.xlu0 %2344
    %v2346 = vsel %vm84, %v2330, -inf
    %2347 = vmax.xlane.f32.xlu0 %v2346
    %v2348 = vpop.xlane.xlu0 %2347
    %v2349 = vsel %vm84, %v2335, -inf
    %2350 = vmax.xlane.f32.xlu0 %v2349
    %v2351 = vpop.xlane.xlu0 %2350
    %v2352 = vsel %vm84, %v2340, -inf
    %2353 = vmax.xlane.f32.xlu0 %v2352
    %v2354 = vpop.xlane.xlu0 %2353
    %v2355 = vsub.f32 %v2325, %v2345
    %v2356 = vsub.f32 %v2330, %v2348
    %v2357 = vsub.f32 %v2335, %v2351
    %v2358 = vsub.f32 %v2340, %v2354
    %v2359 = vmul.f32 %v2355, 1.442695
    %v2360 = vpow.pop %v2359
    %v2361 = vmul.f32 %v2356, 1.442695
    %v2362 = vpow.pop %v2361
    %v2363 = vmul.f32 %v2357, 1.442695
    %v2364 = vpow.pop %v2363
    %v2365 = vmul.f32 %v2358, 1.442695
    %v2366 = vpow.pop %v2365
    %v2367 = vsel %vm84, %v2360, 0.0
    %2368 = vadd.xlane.f32.xlu0 %v2367
    %v2369 = vpop.xlane.xlu0 %2368
    %v2370 = vsel %vm84, %v2362, 0.0
    %2371 = vadd.xlane.f32.xlu0 %v2370
    %v2372 = vpop.xlane.xlu0 %2371
    %v2373 = vsel %vm84, %v2364, 0.0
    %2374 = vadd.xlane.f32.xlu0 %v2373
    %v2375 = vpop.xlane.xlu0 %2374
    %v2376 = vsel %vm84, %v2366, 0.0
    %2377 = vadd.xlane.f32.xlu0 %v2376
    %v2378 = vpop.xlane.xlu0 %2377
    %v2379 = vrcp.pop %v2369
    %v2380 = vmul.f32 %v2360, %v2379
    %v2381 = vrcp.pop %v2372
    %v2382 = vmul.f32 %v2362, %v2381
    %v2383 = vrcp.pop %v2375
    %v2384 = vmul.f32 %v2364, %v2383
    %v2385 = vrcp.pop %v2378
    %v2386 = vmul.f32 %v2366, %v2385
    %2387 = vrot.lane.b32.xlu0 %v344, 32
    %v2388 = vpop.permute.xlu0 %2387
    %2389 = vrot.lane.b32.xlu0 %v350, 32
    %v2390 = vpop.permute.xlu0 %2389
    %2391 = vrot.lane.b32.xlu0 %v356, 32
    %v2392 = vpop.permute.xlu0 %2391
    %2393 = vrot.lane.b32.xlu0 %v362, 32
    %v2394 = vpop.permute.xlu0 %2393
    %v2400 = vsel %vm84, %v2380, 0
    %v2403 = vsel %vm84, %v2382, 0
    %v2406 = vsel %vm84, %v2384, 0
    %v2409 = vsel %vm84, %v2386, 0
    %2411 = vmatprep.subr.mxu0 0.0
    %2412 = vmatpush1.msra.mxu0 %v2388
    %2413 = vmatprep.subr.mxu0 0.0
    %2414 = vmatpush1.msra.mxu0 %v2390
    %2415 = vmatprep.subr.mxu0 0.0
    %2416 = vmatpush1.msra.mxu0 %v2392
    %2417 = vmatprep.subr.mxu0 0.0
    %2418 = vmatpush1.msra.mxu0 %v2394
    %2419 = vmatprep.subr.mxu0 0.0
    %2420 = vmatpush1.msra.mxu0 0.0
    %2421 = vmatprep.subr.mxu0 0.0
    %2422 = vmatpush1.msra.mxu0 0.0
    %2423 = vmatprep.subr.mxu0 0.0
    %2424 = vmatpush1.msra.mxu0 0.0
    %2425 = vmatprep.subr.mxu0 0.0
    %2426 = vmatpush1.msra.mxu0 0.0
    %2427 = vmatprep.subr.mxu0 0.0
    %2428 = vmatpush1.msra.mxu0 0.0
    %2429 = vmatprep.subr.mxu0 0.0
    %2430 = vmatpush1.msra.mxu0 0.0
    %2431 = vmatprep.subr.mxu0 0.0
    %2432 = vmatpush1.msra.mxu0 0.0
    %2433 = vmatprep.subr.mxu0 0.0
    %2434 = vmatpush1.msra.mxu0 0.0
    %2435 = vmatprep.subr.mxu0 0.0
    %2436 = vmatpush1.msra.mxu0 0.0
    %2437 = vmatprep.subr.mxu0 0.0
    %2438 = vmatpush1.msra.mxu0 0.0
    %2439 = vmatprep.subr.mxu0 0.0
    %2440 = vmatpush1.msra.mxu0 0.0
    %2441 = vmatprep.subr.mxu0 0.0
    %2442 = vmatpush1.msra.mxu0 0.0
    %2443 = vmatprep.subr.mxu0 0.0
    %2444 = vmatpush1.msra.mxu0 0.0
    %2445 = vmatprep.subr.mxu0 0.0
    %2446 = vmatpush1.msra.mxu0 0.0
    %2447 = vmatprep.subr.mxu0 0.0
    %2448 = vmatpush1.msra.mxu0 0.0
    %2449 = vmatprep.subr.mxu0 0.0
    %2450 = vmatpush1.msra.mxu0 0.0
    %2451 = vmatprep.subr.mxu0 0.0
    %2452 = vmatpush1.msra.mxu0 0.0
    %2453 = vmatprep.subr.mxu0 0.0
    %2454 = vmatpush1.msra.mxu0 0.0
    %2455 = vmatprep.subr.mxu0 0.0
    %2456 = vmatpush1.msra.mxu0 0.0
    %2457 = vmatprep.subr.mxu0 0.0
    %2458 = vmatpush1.msra.mxu0 0.0
    %2459 = vmatprep.subr.mxu0 0.0
    %2460 = vmatpush1.msra.mxu0 0.0
    %2461 = vmatprep.subr.mxu0 0.0
    %2462 = vmatpush1.msra.mxu0 0.0
    %2463 = vmatprep.subr.mxu0 0.0
    %2464 = vmatpush1.msra.mxu0 0.0
    %2465 = vmatprep.subr.mxu0 0.0
    %2466 = vmatpush1.msra.mxu0 0.0
    %2467 = vmatprep.subr.mxu0 0.0
    %2468 = vmatpush1.msra.mxu0 0.0
    %2469 = vmatprep.subr.mxu0 0.0
    %2470 = vmatpush1.msra.mxu0 0.0
    %2471 = vmatprep.subr.mxu0 0.0
    %2472 = vmatpush1.msra.mxu0 0.0
    %2473 = vmatprep.subr.mxu0 0.0
    %2474 = vmatpush1.msra.mxu0 0.0
    %2475 = vmatprep.mubr.f32.mxu0 0.0
    %2476 = vmatmul.mubr.f32.gmra.mrb[0].mxu0 %v2400
    %v2477 = vpop.f32.mrb[0].mxu0
    %v2478 = vadd.f32 0.0, %v2477
    %v2479 = vpop.f32.mrb[0].mxu0
    %2480 = vmatprep.mubr.f32.mxu0 0.0
    %2481 = vmatmul.mubr.f32.gmra.mrb[0].mxu0 %v2403
    %v2482 = vpop.f32.mrb[0].mxu0
    %v2483 = vadd.f32 0.0, %v2482
    %v2484 = vpop.f32.mrb[0].mxu0
    %2485 = vmatprep.mubr.f32.mxu0 0.0
    %2486 = vmatmul.mubr.f32.gmra.mrb[0].mxu0 %v2406
    %v2487 = vpop.f32.mrb[0].mxu0
    %v2488 = vadd.f32 0.0, %v2487
    %v2489 = vpop.f32.mrb[0].mxu0
    %2490 = vmatprep.mubr.f32.mxu0 0.0
    %2491 = vmatmul.mubr.f32.gmra.mrb[0].mxu0 %v2409
    %v2492 = vpop.f32.mrb[0].mxu0
    %v2493 = vadd.f32 0.0, %v2492
    %v2494 = vpop.f32.mrb[0].mxu0
    %2495 = vdwg.mxu0
    %2500 = vrot.lane.b32.xlu0 %v874, 32
    %v2501 = vpop.permute.xlu0 %2500
    %2502 = vrot.lane.b32.xlu0 %v879, 32
    %v2503 = vpop.permute.xlu0 %2502
    %2504 = vrot.lane.b32.xlu0 %v884, 32
    %v2505 = vpop.permute.xlu0 %2504
    %2506 = vrot.lane.b32.xlu0 %v889, 32
    %v2507 = vpop.permute.xlu0 %2506
    %2516 = vrot.lane.b32.xlu0 %v1144, 64
    %v2517 = vpop.permute.xlu0 %2516
    %2518 = vrot.lane.b32.xlu0 %v1149, 64
    %v2519 = vpop.permute.xlu0 %2518
    %2520 = vrot.lane.b32.xlu0 %v1154, 64
    %v2521 = vpop.permute.xlu0 %2520
    %2522 = vrot.lane.b32.xlu0 %v1159, 64
    %v2523 = vpop.permute.xlu0 %2522
    %2532 = vrot.lane.b32.xlu0 %v1414, 96
    %v2533 = vpop.permute.xlu0 %2532
    %2534 = vrot.lane.b32.xlu0 %v1419, 96
    %v2535 = vpop.permute.xlu0 %2534
    %2536 = vrot.lane.b32.xlu0 %v1424, 96
    %v2537 = vpop.permute.xlu0 %2536
    %2538 = vrot.lane.b32.xlu0 %v1429, 96
    %v2539 = vpop.permute.xlu0 %2538
    %2548 = vrot.lane.b32.xlu0 %v1938, 32
    %v2549 = vpop.permute.xlu0 %2548
    %2550 = vrot.lane.b32.xlu0 %v1943, 32
    %v2551 = vpop.permute.xlu0 %2550
    %2552 = vrot.lane.b32.xlu0 %v1948, 32
    %v2553 = vpop.permute.xlu0 %2552
    %2554 = vrot.lane.b32.xlu0 %v1953, 32
    %v2555 = vpop.permute.xlu0 %2554
    %2564 = vrot.lane.b32.xlu0 %v2208, 64
    %v2565 = vpop.permute.xlu0 %2564
    %2566 = vrot.lane.b32.xlu0 %v2213, 64
    %v2567 = vpop.permute.xlu0 %2566
    %2568 = vrot.lane.b32.xlu0 %v2218, 64
    %v2569 = vpop.permute.xlu0 %2568
    %2570 = vrot.lane.b32.xlu0 %v2223, 64
    %v2571 = vpop.permute.xlu0 %2570
    %2580 = vrot.lane.b32.xlu0 %v2478, 96
    %v2581 = vpop.permute.xlu0 %2580
    %2582 = vrot.lane.b32.xlu0 %v2483, 96
    %v2583 = vpop.permute.xlu0 %2582
    %2584 = vrot.lane.b32.xlu0 %v2488, 96
    %v2585 = vpop.permute.xlu0 %2584
    %2586 = vrot.lane.b32.xlu0 %v2493, 96
    %v2587 = vpop.permute.xlu0 %2586
    %v2592 = vsel %vm84, %v600, %v2501
    %v2593 = vsel %vm84, %v605, %v2503
    %v2594 = vsel %vm84, %v610, %v2505
    %v2595 = vsel %vm84, %v615, %v2507
    %vm2596 = vcmask 523264
    %v2597 = vsel %vm2596, %v2592, %v2517
    %v2598 = vsel %vm2596, %v2593, %v2519
    %v2599 = vsel %vm2596, %v2594, %v2521
    %v2600 = vsel %vm2596, %v2595, %v2523
    %vm2601 = vcmask 785408
    %v2602 = vsel %vm2601, %v2597, %v2533
    %v2603 = vsel %vm2601, %v2598, %v2535
    %v2604 = vsel %vm2601, %v2599, %v2537
    %v2605 = vsel %vm2601, %v2600, %v2539
    %v2606 = vsel %vm84, %v1664, %v2549
    %v2607 = vsel %vm84, %v1669, %v2551
    %v2608 = vsel %vm84, %v1674, %v2553
    %v2609 = vsel %vm84, %v1679, %v2555
    %v2610 = vsel %vm2596, %v2606, %v2565
    %v2611 = vsel %vm2596, %v2607, %v2567
    %v2612 = vsel %vm2596, %v2608, %v2569
    %v2613 = vsel %vm2596, %v2609, %v2571
    %v2614 = vsel %vm2601, %v2610, %v2581
    %v2615 = vsel %vm2601, %v2611, %v2583
    %v2616 = vsel %vm2601, %v2612, %v2585
    %v2617 = vsel %vm2601, %v2613, %v2587
    %v2618 = vld [vmem:[%s3] sm:$0xff]
    %v2619 = vld [vmem:[%s3 + $0x8] sm:$0xff]
    %v2620 = vld [vmem:[%s3 + $0x10] sm:$0xff]
    %v2621 = vld [vmem:[%s3 + $0x18] sm:$0xff]
    %v2622 = vld [vmem:[%s3 + $0x20] sm:$0xff]
    %v2623 = vld [vmem:[%s3 + $0x28] sm:$0xff]
    %v2624 = vld [vmem:[%s3 + $0x30] sm:$0xff]
    %v2625 = vld [vmem:[%s3 + $0x38] sm:$0xff]
    %v2626 = vld [vmem:[%s3 + $0x40] sm:$0xff]
    %v2627 = vld [vmem:[%s3 + $0x48] sm:$0xff]
    %v2628 = vld [vmem:[%s3 + $0x50] sm:$0xff]
    %v2629 = vld [vmem:[%s3 + $0x58] sm:$0xff]
    %v2630 = vld [vmem:[%s3 + $0x60] sm:$0xff]
    %v2631 = vld [vmem:[%s3 + $0x68] sm:$0xff]
    %v2632 = vld [vmem:[%s3 + $0x70] sm:$0xff]
    %v2633 = vld [vmem:[%s3 + $0x78] sm:$0xff]
    %v2634 = vld [vmem:[%s3 + $0x80] sm:$0xff]
    %v2635 = vld [vmem:[%s3 + $0x88] sm:$0xff]
    %v2636 = vld [vmem:[%s3 + $0x90] sm:$0xff]
    %v2637 = vld [vmem:[%s3 + $0x98] sm:$0xff]
    %v2638 = vld [vmem:[%s3 + $0xa0] sm:$0xff]
    %v2639 = vld [vmem:[%s3 + $0xa8] sm:$0xff]
    %v2640 = vld [vmem:[%s3 + $0xb0] sm:$0xff]
    %v2641 = vld [vmem:[%s3 + $0xb8] sm:$0xff]
    %v2642 = vld [vmem:[%s3 + $0xc0] sm:$0xff]
    %v2643 = vld [vmem:[%s3 + $0xc8] sm:$0xff]
    %v2644 = vld [vmem:[%s3 + $0xd0] sm:$0xff]
    %v2645 = vld [vmem:[%s3 + $0xd8] sm:$0xff]
    %v2646 = vld [vmem:[%s3 + $0xe0] sm:$0xff]
    %v2647 = vld [vmem:[%s3 + $0xe8] sm:$0xff]
    %v2648 = vld [vmem:[%s3 + $0xf0] sm:$0xff]
    %v2649 = vld [vmem:[%s3 + $0xf8] sm:$0xff]
    %v2650 = vld [vmem:[%s4] sm:$0x1]
    %v2652 = vlaneseq
    %v2653 = vshrl.u32 %v2652, 7
    %v2654 = vsub.s32 0, %v2653
    %v2655 = vrot.slane %v2650, %v2654
    %2657 = vmatprep.subr.mxu0 0.0
    %2658 = vmatpush1.msra.mxu0 %v2618
    %2659 = vmatprep.subr.mxu0 0.0
    %2660 = vmatpush1.msra.mxu0 %v2619
    %2661 = vmatprep.subr.mxu0 0.0
    %2662 = vmatpush1.msra.mxu0 %v2620
    %2663 = vmatprep.subr.mxu0 0.0
    %2664 = vmatpush1.msra.mxu0 %v2621
    %2665 = vmatprep.subr.mxu0 0.0
    %2666 = vmatpush1.msra.mxu0 %v2622
    %2667 = vmatprep.subr.mxu0 0.0
    %2668 = vmatpush1.msra.mxu0 %v2623
    %2669 = vmatprep.subr.mxu0 0.0
    %2670 = vmatpush1.msra.mxu0 %v2624
    %2671 = vmatprep.subr.mxu0 0.0
    %2672 = vmatpush1.msra.mxu0 %v2625
    %2673 = vmatprep.subr.mxu0 0.0
    %2674 = vmatpush1.msra.mxu0 %v2626
    %2675 = vmatprep.subr.mxu0 0.0
    %2676 = vmatpush1.msra.mxu0 %v2627
    %2677 = vmatprep.subr.mxu0 0.0
    %2678 = vmatpush1.msra.mxu0 %v2628
    %2679 = vmatprep.subr.mxu0 0.0
    %2680 = vmatpush1.msra.mxu0 %v2629
    %2681 = vmatprep.subr.mxu0 0.0
    %2682 = vmatpush1.msra.mxu0 %v2630
    %2683 = vmatprep.subr.mxu0 0.0
    %2684 = vmatpush1.msra.mxu0 %v2631
    %2685 = vmatprep.subr.mxu0 0.0
    %2686 = vmatpush1.msra.mxu0 %v2632
    %2687 = vmatprep.subr.mxu0 0.0
    %2688 = vmatpush1.msra.mxu0 %v2633
    %2689 = vmatprep.subr.mxu0 0.0
    %2690 = vmatpush1.msra.mxu0 %v2634
    %2691 = vmatprep.subr.mxu0 0.0
    %2692 = vmatpush1.msra.mxu0 %v2635
    %2693 = vmatprep.subr.mxu0 0.0
    %2694 = vmatpush1.msra.mxu0 %v2636
    %2695 = vmatprep.subr.mxu0 0.0
    %2696 = vmatpush1.msra.mxu0 %v2637
    %2697 = vmatprep.subr.mxu0 0.0
    %2698 = vmatpush1.msra.mxu0 %v2638
    %2699 = vmatprep.subr.mxu0 0.0
    %2700 = vmatpush1.msra.mxu0 %v2639
    %2701 = vmatprep.subr.mxu0 0.0
    %2702 = vmatpush1.msra.mxu0 %v2640
    %2703 = vmatprep.subr.mxu0 0.0
    %2704 = vmatpush1.msra.mxu0 %v2641
    %2705 = vmatprep.subr.mxu0 0.0
    %2706 = vmatpush1.msra.mxu0 %v2642
    %2707 = vmatprep.subr.mxu0 0.0
    %2708 = vmatpush1.msra.mxu0 %v2643
    %2709 = vmatprep.subr.mxu0 0.0
    %2710 = vmatpush1.msra.mxu0 %v2644
    %2711 = vmatprep.subr.mxu0 0.0
    %2712 = vmatpush1.msra.mxu0 %v2645
    %2713 = vmatprep.subr.mxu0 0.0
    %2714 = vmatpush1.msra.mxu0 %v2646
    %2715 = vmatprep.subr.mxu0 0.0
    %2716 = vmatpush1.msra.mxu0 %v2647
    %2717 = vmatprep.subr.mxu0 0.0
    %2718 = vmatpush1.msra.mxu0 %v2648
    %2719 = vmatprep.subr.mxu0 0.0
    %2720 = vmatpush1.msra.mxu0 %v2649
    %2721 = vmatprep.mubr.f32.mxu0 %v2614
    %2722 = vmatmul.mubr.f32.gmra.mrb[0].mxu0 %v2602
    %v2723 = vpop.f32.mrb[0].mxu0
    %v2724 = vadd.f32 %v2655, %v2723
    %v2725 = vpop.f32.mrb[0].mxu0
    %2726 = vmatprep.mubr.f32.mxu0 %v2615
    %2727 = vmatmul.mubr.f32.gmra.mrb[0].mxu0 %v2603
    %v2728 = vpop.f32.mrb[0].mxu0
    %v2729 = vadd.f32 %v2655, %v2728
    %v2730 = vpop.f32.mrb[0].mxu0
    %2731 = vmatprep.mubr.f32.mxu0 %v2616
    %2732 = vmatmul.mubr.f32.gmra.mrb[0].mxu0 %v2604
    %v2733 = vpop.f32.mrb[0].mxu0
    %v2734 = vadd.f32 %v2655, %v2733
    %v2735 = vpop.f32.mrb[0].mxu0
    %2736 = vmatprep.mubr.f32.mxu0 %v2617
    %2737 = vmatmul.mubr.f32.gmra.mrb[0].mxu0 %v2605
    %v2738 = vpop.f32.mrb[0].mxu0
    %v2739 = vadd.f32 %v2655, %v2738
    %v2740 = vpop.f32.mrb[0].mxu0
    %2741 = vdwg.mxu0
    %2742 = vst.msk [vmem:[#allocation2] sm:$0xff] %vm84, %v2724
    %2743 = vst.msk [vmem:[#allocation2 + $0x8] sm:$0xff] %vm84, %v2729
    %2744 = vst.msk [vmem:[#allocation2 + $0x10] sm:$0xff] %vm84, %v2734
    %2745 = vst.msk [vmem:[#allocation2 + $0x18] sm:$0xff] %vm84, %v2739
    // Predicated region
    $region26: #{tpu_custom_call.1} parent=1 // pred_check
      _
    $region27: #{tpu_custom_call.1} parent=1 // pred_check_branch
      %2747 = sbr.rel (0) target = $region29
    $region28: #{tpu_custom_call.1} parent=1 // pred_region
      %s2749 = ssub.s32 512, 512
      %2750 = vsyncadd [#allocation3], %s2749
      %s2751 = sshll.u32 [#allocation2], 4
      %s2752 = int_to_ptr.vmem [resolvable:$true] %s2751
      %2757 = dma.vmem_to_hbm [thread:$0]  %s2752, 512, %s6, [#allocation3], 128, 128, 8
    $region29: #{tpu_custom_call.1} parent=1 // pred_fallthru
      _
    // Predicated region
    $region30: #{tpu_custom_call.1} parent=1 // pred_check
      _
    $region31: #{tpu_custom_call.1} parent=1 // pred_check_branch
      %2759 = sbr.rel (0) target = $region33
    $region32: #{tpu_custom_call.1} parent=1 // pred_region
      %2760 = dma.done [#allocation3], 512
    $region33: #{tpu_custom_call.1} parent=1 // pred_fallthru
      _
    %2761 = vsyncpa [#allocation3], 1

</llo_original>
